<compile_context>
chip_gen: v5e
topology: v5e:2x2
jax: 0.10.0
libtpu: 0.0.40
codegen_flags: <defaults>
</compile_context>

<pallas_src>
import math

import jax
import jax.numpy as jnp
import numpy as np
from jax import lax
from jax.experimental import pallas as pl
from jax.experimental.pallas import tpu as pltpu

# ---------------- config (small synthetic shapes) ----------------
B = 2          # batch (both passages and questions)
S = 8          # sequence length
V = 32         # vocab size
MAXPOS = 16    # max positions
H = 32         # hidden size
NH = 2         # attention heads
DH = H // NH   # head dim
FFN = 64       # intermediate size
LN_EPS = 1e-12
NEG_INF = -1e9
NTOK = 2 * B * S          # rows of regular token embeddings in the emb slab


def _gelu(x):
    # tanh approximation (EUP-friendly)
    return 0.5 * x * (1.0 + jnp.tanh(0.7978845608028654 * (x + 0.044715 * x * x * x)))


def _layer_norm(x, g, b):
    mu = jnp.mean(x, axis=-1, keepdims=True)
    var = jnp.mean((x - mu) ** 2, axis=-1, keepdims=True)
    return (x - mu) * jax.lax.rsqrt(var + LN_EPS) * g + b


def _dot_nt(a, b):
    # a @ b.T without an explicit (XLU) transpose.
    return lax.dot_general(a, b, (((1,), (1,)), ((), ())),
                           preferred_element_type=jnp.float32)


# ---------------- fused Pallas kernel: two encoders + score + loss ----------------
# Packed-input layouts (built host-side in dpr_forward):
#   emb_ref   : (2*B*S + 2*B, H)  rows [0:16) passage tokens, [16:32) question
#               tokens, [32:34) passage CLS rows, [34:36) question CLS rows.
#   bias_ref  : (2*B, B*S)        block-diagonal + padding attention bias.
#   w32_ref   : (2, 160, 32)      rows: wq[0:32) wo[32:64) wp[64:96) w2[96:160).
#   w64_ref   : (2, 64, 64)       rows: [wk|wv][0:32)  w1[32:64).
#   vec_ref   : (2, 8, 128)       row0: ln0_g|ln1_g|ln2_g ; row1: *_b ;
#                                 row2: bq|bk|bv|bo ; row3: b1|b2|bp.
#   labels_ref: (B,) int32 in SMEM.
# Output: one (8, 128) f32 tile: rows [0:2B) pooled, [2B:3B) score (lanes 0:B),
#         row 3B lane 0 = loss.
def dpr_kernel(emb_ref, bias_ref, w32_ref, w64_ref, vec_ref, labels_ref, out_ref):
    scale = 1.0 / math.sqrt(DH)
    pooled = []

    for e in range(2):                                # 0 = passage, 1 = question
        vec = vec_ref[e]                              # (8, 128)
        ln0g, ln1g, ln2g = vec[0:1, 0:32], vec[0:1, 32:64], vec[0:1, 64:96]
        ln0b, ln1b, ln2b = vec[1:2, 0:32], vec[1:2, 32:64], vec[1:2, 64:96]
        bq, bkv, bo = vec[2:3, 0:32], vec[2:3, 32:96], vec[2:3, 96:128]
        b1, b2, bp = vec[3:4, 0:64], vec[3:4, 64:96], vec[3:4, 96:128]

        wm32 = w32_ref[e]                             # (160, 32)
        wq, wo, wp, w2 = wm32[0:32], wm32[32:64], wm32[64:96], wm32[96:160]
        wm64 = w64_ref[e]                             # (64, 64)
        wkv, w1 = wm64[0:32], wm64[32:64]

        # embedding LayerNorm on all rows (needed by K / V) and on CLS rows
        x = _layer_norm(emb_ref[e * B * S:(e + 1) * B * S, :], ln0g, ln0b)   # (B*S, H)
        x_cls = _layer_norm(emb_ref[NTOK + e * B:NTOK + (e + 1) * B, :],
                            ln0g, ln0b)                                      # (B, H)

        # fused K/V for all rows; Q only for the B CLS rows
        kv = jnp.dot(x, wkv, preferred_element_type=jnp.float32) + bkv       # (B*S, 2H)
        q = jnp.dot(x_cls, wq, preferred_element_type=jnp.float32) + bq      # (B, H)

        bias_e = bias_ref[e * B:(e + 1) * B, :]                              # (B, B*S)

        # batched CLS attention over all B queries with block-diagonal bias
        ctx_heads = []
        for h in range(NH):                           # static unroll (NH = 2)
            q_h = q[:, h * DH:(h + 1) * DH]                                  # (B, DH)
            k_h = kv[:, h * DH:(h + 1) * DH]                                 # (B*S, DH)
            v_h = kv[:, H + h * DH:H + (h + 1) * DH]                         # (B*S, DH)
            s = _dot_nt(q_h, k_h) * scale + bias_e                           # (B, B*S)
            s = s - jnp.max(s, axis=-1, keepdims=True)
            p = jnp.exp(s)
            p = p / jnp.sum(p, axis=-1, keepdims=True)       # exact (tolerance-safe)
            ctx_heads.append(jnp.dot(p, v_h, preferred_element_type=jnp.float32))
        ctx = jnp.concatenate(ctx_heads, axis=-1)                            # (B, H)

        # single W_o matmul per encoder (f32 accumulator; MRB-friendly on v7x)
        attn = jnp.dot(ctx, wo, preferred_element_type=jnp.float32) + bo     # (B, H)
        x1 = _layer_norm(x_cls + attn, ln1g, ln1b)

        # feed-forward (CLS rows only)
        h1 = _gelu(jnp.dot(x1, w1, preferred_element_type=jnp.float32) + b1)  # (B, FFN)
        h2 = jnp.dot(h1, w2, preferred_element_type=jnp.float32) + b2
        x2 = _layer_norm(x1 + h2, ln2g, ln2b)

        pooled.append(jnp.tanh(
            jnp.dot(x2, wp, preferred_element_type=jnp.float32) + bp))        # (B, H)

    ep, eq = pooled[0], pooled[1]

    # score = eq @ ep.T (NT dot_general), log_softmax, NLL loss
    score = _dot_nt(eq, ep)                                                   # (B, B)
    m = jnp.max(score, axis=-1, keepdims=True)
    lse = m + jnp.log(jnp.sum(jnp.exp(score - m), axis=-1, keepdims=True))
    logp = score - lse

    picked = jnp.zeros((1, 1), jnp.float32)
    cols = lax.broadcasted_iota(jnp.int32, (1, B), 1)
    for b in range(B):                                # static unroll (B = 2)
        lab = labels_ref[b]                           # scalar read from SMEM
        picked = picked + jnp.sum(jnp.where(cols == lab, logp[b:b + 1, :], 0.0),
                                  axis=-1, keepdims=True)
    loss11 = -picked / jnp.float32(B)                                         # (1, 1)

    # single lane-dense (8, 128) store: pooled rows, score rows, loss row, pad
    pooled_rows = jnp.concatenate(
        [jnp.concatenate([ep, eq], axis=0),
         jnp.zeros((2 * B, 128 - H), jnp.float32)], axis=1)                   # (4, 128)
    score_rows = jnp.concatenate(
        [score, jnp.zeros((B, 128 - B), jnp.float32)], axis=1)                # (2, 128)
    loss_row = jnp.concatenate(
        [loss11, jnp.zeros((1, 127), jnp.float32)], axis=1)                   # (1, 128)
    pad_rows = jnp.zeros((8 - (3 * B + 1), 128), jnp.float32)                 # (1, 128)
    out_ref[...] = jnp.concatenate(
        [pooled_rows, score_rows, loss_row, pad_rows], axis=0)                # (8, 128)


# ---------------- host-side packing + wrapper ----------------
def _pack_mats(p):
    w32 = jnp.concatenate([p["wq"], p["wo"], p["wp"], p["w2"]], axis=0)       # (160, 32)
    wkv = jnp.concatenate([p["wk"], p["wv"]], axis=1)                          # (32, 64)
    w64 = jnp.concatenate([wkv, p["w1"]], axis=0)                              # (64, 64)
    return w32, w64


def _pack_vec(p):
    z32 = jnp.zeros((1, 32), jnp.float32)
    row0 = jnp.concatenate([p["ln0_g"], p["ln1_g"], p["ln2_g"], z32], axis=1)
    row1 = jnp.concatenate([p["ln0_b"], p["ln1_b"], p["ln2_b"], z32], axis=1)
    row2 = jnp.concatenate([p["bq"], p["bk"], p["bv"], p["bo"]], axis=1)
    row3 = jnp.concatenate([p["b1"], p["b2"], p["bp"]], axis=1)
    return jnp.concatenate(
        [row0, row1, row2, row3, jnp.zeros((4, 128), jnp.float32)], axis=0)    # (8, 128)


def _embed(p, ids, ttids):
    s = ids.shape[1]
    return (p["word_emb"][ids] + p["pos_emb"][jnp.arange(s)][None, :, :]
            + p["type_emb"][ttids]).astype(jnp.float32)


def _attn_bias(mask):
    # (B, S) padding mask -> (B, B*S) bias with padding and cross-batch -1e9.
    bb, ss = mask.shape
    pad = (1.0 - mask.astype(jnp.float32)) * NEG_INF                           # (B, S)
    kb = (jnp.arange(bb * ss) // ss)[None, :]                                  # (1, B*S)
    qb = jnp.arange(bb)[:, None]                                               # (B, 1)
    block = jnp.where(qb == kb, 0.0, NEG_INF)                                  # (B, B*S)
    return block + jnp.broadcast_to(pad.reshape(1, bb * ss), (bb, bb * ss))


def dpr_forward(params_p, params_q,
                passage_input_ids, passage_attention_mask, passage_token_type_ids,
                question_input_ids, question_attention_mask, question_token_type_ids,
                labels=None):
    # fix_p_encoder / fix_q_encoder only gate gradient flow in torch; forward
    # values are identical, so they are no-ops here.
    b, s = passage_input_ids.shape

    emb_p = _embed(params_p, passage_input_ids, passage_token_type_ids)       # (B, S, H)
    emb_q = _embed(params_q, question_input_ids, question_token_type_ids)
    emb_all = jnp.concatenate([emb_p, emb_q], axis=0).reshape(2 * b * s, H)
    # append the 2*B CLS rows so the kernel reads them as plain static slices
    emb_packed = jnp.concatenate([emb_all, emb_all[::s, :]], axis=0)           # (36, 32)

    bias = jnp.concatenate([_attn_bias(passage_attention_mask),
                            _attn_bias(question_attention_mask)], axis=0)      # (4, 16)

    w32_p, w64_p = _pack_mats(params_p)
    w32_q, w64_q = _pack_mats(params_q)
    wmat32 = jnp.stack([w32_p, w32_q], axis=0)                                 # (2, 160, 32)
    wmat64 = jnp.stack([w64_p, w64_q], axis=0)                                 # (2, 64, 64)
    vec = jnp.stack([_pack_vec(params_p), _pack_vec(params_q)], axis=0)        # (2, 8, 128)

    have_labels = labels is not None
    labels_arr = (labels if have_labels else jnp.zeros((b,), jnp.int32))
    labels_arr = labels_arr.astype(jnp.int32).reshape(b)

    out = pl.pallas_call(
        dpr_kernel,
        out_shape=jax.ShapeDtypeStruct((8, 128), jnp.float32),
        in_specs=[
            pl.BlockSpec(memory_space=pltpu.MemorySpace.VMEM),   # emb
            pl.BlockSpec(memory_space=pltpu.MemorySpace.VMEM),   # bias
            pl.BlockSpec(memory_space=pltpu.MemorySpace.VMEM),   # wmat32
            pl.BlockSpec(memory_space=pltpu.MemorySpace.VMEM),   # wmat64
            pl.BlockSpec(memory_space=pltpu.MemorySpace.VMEM),   # vec
            pl.BlockSpec(memory_space=pltpu.MemorySpace.SMEM),   # labels
        ],
        out_specs=pl.BlockSpec(memory_space=pltpu.MemorySpace.VMEM),
    )(emb_packed, bias, wmat32, wmat64, vec, labels_arr)

    ep = out[0:b, 0:H]
    eq = out[b:2 * b, 0:H]
    if not have_labels:
        return ep, eq
    score = out[2 * b:3 * b, 0:b]
    loss = out[3 * b, 0]
    return ep, eq, score, loss


# ---------------- deterministic parameter init ----------------
def init_encoder_params(key):
    ks = jax.random.split(key, 10)

    def nrm(k, shape):
        return 0.02 * jax.random.normal(k, shape, jnp.float32)

    return {
        "word_emb": nrm(ks[0], (V, H)),
        "pos_emb": nrm(ks[1], (MAXPOS, H)),
        "type_emb": nrm(ks[2], (2, H)),
        "ln0_g": jnp.ones((1, H), jnp.float32), "ln0_b": jnp.zeros((1, H), jnp.float32),
        "wq": nrm(ks[3], (H, H)), "bq": jnp.zeros((1, H), jnp.float32),
        "wk": nrm(ks[4], (H, H)), "bk": jnp.zeros((1, H), jnp.float32),
        "wv": nrm(ks[5], (H, H)), "bv": jnp.zeros((1, H), jnp.float32),
        "wo": nrm(ks[6], (H, H)), "bo": jnp.zeros((1, H), jnp.float32),
        "ln1_g": jnp.ones((1, H), jnp.float32), "ln1_b": jnp.zeros((1, H), jnp.float32),
        "w1": nrm(ks[7], (H, FFN)), "b1": jnp.zeros((1, FFN), jnp.float32),
        "w2": nrm(ks[8], (FFN, H)), "b2": jnp.zeros((1, H), jnp.float32),
        "ln2_g": jnp.ones((1, H), jnp.float32), "ln2_b": jnp.zeros((1, H), jnp.float32),
        "wp": nrm(ks[9], (H, H)), "bp": jnp.zeros((1, H), jnp.float32),
    }


# ---------------- pure-JAX reference (for numerical check) ----------------
def encode_ref(p, ids, mask, ttids):
    b, s = ids.shape
    emb = (p["word_emb"][ids] + p["pos_emb"][jnp.arange(s)][None] + p["type_emb"][ttids])
    x = _layer_norm(emb, p["ln0_g"], p["ln0_b"])
    q = x @ p["wq"] + p["bq"]
    k = x @ p["wk"] + p["bk"]
    v = x @ p["wv"] + p["bv"]
    q = q.reshape(b, s, NH, DH).transpose(0, 2, 1, 3)
    k = k.reshape(b, s, NH, DH).transpose(0, 2, 1, 3)
    v = v.reshape(b, s, NH, DH).transpose(0, 2, 1, 3)
    bias = ((1.0 - mask.astype(jnp.float32)) * NEG_INF)[:, None, None, :]
    sc = jnp.einsum("bhqd,bhkd->bhqk", q, k) / math.sqrt(DH) + bias
    sc = sc - jnp.max(sc, axis=-1, keepdims=True)
    pr = jnp.exp(sc)
    pr = pr / jnp.sum(pr, axis=-1, keepdims=True)
    ctx = jnp.einsum("bhqk,bhkd->bhqd", pr, v).transpose(0, 2, 1, 3).reshape(b, s, H)
    attn_out = ctx @ p["wo"] + p["bo"]
    x = _layer_norm(x + attn_out, p["ln1_g"], p["ln1_b"])
    h = _gelu(x @ p["w1"] + p["b1"]) @ p["w2"] + p["b2"]
    x = _layer_norm(x + h, p["ln2_g"], p["ln2_b"])
    return jnp.tanh(x[:, 0, :] @ p["wp"] + p["bp"])


def dpr_forward_ref(pp, pq, pi, pm, pt, qi, qm, qt, labels):
    ep = encode_ref(pp, pi, pm, pt)
    eq = encode_ref(pq, qi, qm, qt)
    score = eq @ ep.T
    logp = jax.nn.log_softmax(score, axis=-1)
    loss = -jnp.mean(logp[jnp.arange(labels.shape[0]), labels])
    return ep, eq, score, loss


# ---------------- main ----------------
if __name__ == "__main__":
    key = jax.random.PRNGKey(0)
    kp, kq, k1, k2 = jax.random.split(key, 4)

    params_p = init_encoder_params(kp)
    params_q = init_encoder_params(kq)

    passage_input_ids = jax.random.randint(k1, (B, S), 0, V, dtype=jnp.int32)
    question_input_ids = jax.random.randint(k2, (B, S), 0, V, dtype=jnp.int32)
    passage_attention_mask = jnp.array([[1] * S, [1] * (S - 2) + [0] * 2], jnp.int32)
    question_attention_mask = jnp.array([[1] * (S - 1) + [0], [1] * S], jnp.int32)
    passage_token_type_ids = jnp.zeros((B, S), jnp.int32)
    question_token_type_ids = jnp.zeros((B, S), jnp.int32)
    labels = jnp.arange(B, dtype=jnp.int32)

    ep, eq, score, loss = dpr_forward(
        params_p, params_q,
        passage_input_ids, passage_attention_mask, passage_token_type_ids,
        question_input_ids, question_attention_mask, question_token_type_ids,
        labels,
    )
    jax.block_until_ready((ep, eq, score, loss))

    # numerical check against a pure-JAX reference
    ep_r, eq_r, score_r, loss_r = dpr_forward_ref(
        params_p, params_q,
        passage_input_ids, passage_attention_mask, passage_token_type_ids,
        question_input_ids, question_attention_mask, question_token_type_ids,
        labels,
    )
    np.testing.assert_allclose(np.asarray(ep), np.asarray(ep_r), rtol=1e-4, atol=1e-4)
    np.testing.assert_allclose(np.asarray(eq), np.asarray(eq_r), rtol=1e-4, atol=1e-4)
    np.testing.assert_allclose(np.asarray(score), np.asarray(score_r), rtol=1e-4, atol=1e-4)
    np.testing.assert_allclose(np.asarray(loss), np.asarray(loss_r), rtol=1e-4, atol=1e-4)

    print("KERNEL_OK")
</pallas_src>

<mosaic_0001>
module attributes {stable_mosaic.version = 11 : i64} {
  func.func @dpr_kernel(%arg0: memref<36x32xf32, #tpu.memory_space<vmem>>, %arg1: memref<4x16xf32, #tpu.memory_space<vmem>>, %arg2: memref<2x160x32xf32, #tpu.memory_space<vmem>>, %arg3: memref<2x64x64xf32, #tpu.memory_space<vmem>>, %arg4: memref<2x8x128xf32, #tpu.memory_space<vmem>>, %arg5: memref<2xi32, #tpu.memory_space<smem>>, %arg6: memref<8x128xf32, #tpu.memory_space<vmem>>) attributes {dimension_semantics = [], scalar_prefetch = 0 : i64, scratch_operands = 0 : i64, tpu.core_type = #tpu.core_type<tc>} {
    %c0 = arith.constant 0 : index
    %c0_0 = arith.constant 0 : index
    %c0_1 = arith.constant 0 : index
    %0 = vector.load %arg4[%c0, %c0_0, %c0_1] : memref<2x8x128xf32, #tpu.memory_space<vmem>>, vector<1x8x128xf32>
    %1 = vector.shape_cast %0 : vector<1x8x128xf32> to vector<8x128xf32>
    %2 = vector.extract_strided_slice %1 {offsets = [0, 0], sizes = [1, 32], strides = [1, 1]} : vector<8x128xf32> to vector<1x32xf32>
    %3 = vector.extract_strided_slice %1 {offsets = [0, 32], sizes = [1, 32], strides = [1, 1]} : vector<8x128xf32> to vector<1x32xf32>
    %4 = vector.extract_strided_slice %1 {offsets = [0, 64], sizes = [1, 32], strides = [1, 1]} : vector<8x128xf32> to vector<1x32xf32>
    %5 = vector.extract_strided_slice %1 {offsets = [1, 0], sizes = [1, 32], strides = [1, 1]} : vector<8x128xf32> to vector<1x32xf32>
    %6 = vector.extract_strided_slice %1 {offsets = [1, 32], sizes = [1, 32], strides = [1, 1]} : vector<8x128xf32> to vector<1x32xf32>
    %7 = vector.extract_strided_slice %1 {offsets = [1, 64], sizes = [1, 32], strides = [1, 1]} : vector<8x128xf32> to vector<1x32xf32>
    %8 = vector.extract_strided_slice %1 {offsets = [2, 0], sizes = [1, 32], strides = [1, 1]} : vector<8x128xf32> to vector<1x32xf32>
    %9 = vector.extract_strided_slice %1 {offsets = [2, 32], sizes = [1, 64], strides = [1, 1]} : vector<8x128xf32> to vector<1x64xf32>
    %10 = vector.extract_strided_slice %1 {offsets = [2, 96], sizes = [1, 32], strides = [1, 1]} : vector<8x128xf32> to vector<1x32xf32>
    %11 = vector.extract_strided_slice %1 {offsets = [3, 0], sizes = [1, 64], strides = [1, 1]} : vector<8x128xf32> to vector<1x64xf32>
    %12 = vector.extract_strided_slice %1 {offsets = [3, 64], sizes = [1, 32], strides = [1, 1]} : vector<8x128xf32> to vector<1x32xf32>
    %13 = vector.extract_strided_slice %1 {offsets = [3, 96], sizes = [1, 32], strides = [1, 1]} : vector<8x128xf32> to vector<1x32xf32>
    %c0_2 = arith.constant 0 : index
    %c0_3 = arith.constant 0 : index
    %c0_4 = arith.constant 0 : index
    %14 = vector.load %arg2[%c0_2, %c0_3, %c0_4] : memref<2x160x32xf32, #tpu.memory_space<vmem>>, vector<1x160x32xf32>
    %15 = vector.shape_cast %14 : vector<1x160x32xf32> to vector<160x32xf32>
    %16 = vector.extract_strided_slice %15 {offsets = [0, 0], sizes = [32, 32], strides = [1, 1]} : vector<160x32xf32> to vector<32x32xf32>
    %17 = vector.extract_strided_slice %15 {offsets = [32, 0], sizes = [32, 32], strides = [1, 1]} : vector<160x32xf32> to vector<32x32xf32>
    %18 = vector.extract_strided_slice %15 {offsets = [64, 0], sizes = [32, 32], strides = [1, 1]} : vector<160x32xf32> to vector<32x32xf32>
    %19 = vector.extract_strided_slice %15 {offsets = [96, 0], sizes = [64, 32], strides = [1, 1]} : vector<160x32xf32> to vector<64x32xf32>
    %c0_5 = arith.constant 0 : index
    %c0_6 = arith.constant 0 : index
    %c0_7 = arith.constant 0 : index
    %20 = vector.load %arg3[%c0_5, %c0_6, %c0_7] : memref<2x64x64xf32, #tpu.memory_space<vmem>>, vector<1x64x64xf32>
    %21 = vector.shape_cast %20 : vector<1x64x64xf32> to vector<64x64xf32>
    %22 = vector.extract_strided_slice %21 {offsets = [0, 0], sizes = [32, 64], strides = [1, 1]} : vector<64x64xf32> to vector<32x64xf32>
    %23 = vector.extract_strided_slice %21 {offsets = [32, 0], sizes = [32, 64], strides = [1, 1]} : vector<64x64xf32> to vector<32x64xf32>
    %c0_8 = arith.constant 0 : index
    %c0_9 = arith.constant 0 : index
    %24 = vector.load %arg0[%c0_8, %c0_9] : memref<36x32xf32, #tpu.memory_space<vmem>>, vector<16x32xf32>
    %cst = arith.constant dense<0.000000e+00> : vector<16xf32>
    %25 = vector.multi_reduction <add>, %24, %cst [1] : vector<16x32xf32> to vector<16xf32>
    %26 = vector.shape_cast %25 : vector<16xf32> to vector<16x1xf32>
    %cst_10 = arith.constant 3.200000e+01 : f32
    %27 = vector.broadcast %cst_10 : f32 to vector<16x1xf32>
    %28 = arith.divf %26, %27 : vector<16x1xf32>
    %29 = vector.broadcast %28 : vector<16x1xf32> to vector<16x32xf32>
    %30 = arith.subf %24, %29 : vector<16x32xf32>
    %31 = arith.mulf %30, %30 : vector<16x32xf32>
    %cst_11 = arith.constant dense<0.000000e+00> : vector<16xf32>
    %32 = vector.multi_reduction <add>, %31, %cst_11 [1] : vector<16x32xf32> to vector<16xf32>
    %33 = vector.shape_cast %32 : vector<16xf32> to vector<16x1xf32>
    %cst_12 = arith.constant 3.200000e+01 : f32
    %34 = vector.broadcast %cst_12 : f32 to vector<16x1xf32>
    %35 = arith.divf %33, %34 : vector<16x1xf32>
    %36 = vector.broadcast %28 : vector<16x1xf32> to vector<16x32xf32>
    %37 = arith.subf %24, %36 : vector<16x32xf32>
    %cst_13 = arith.constant 9.99999996E-13 : f32
    %38 = vector.broadcast %cst_13 : f32 to vector<16x1xf32>
    %39 = arith.addf %35, %38 : vector<16x1xf32>
    %40 = math.rsqrt %39 : vector<16x1xf32>
    %41 = vector.broadcast %40 : vector<16x1xf32> to vector<16x32xf32>
    %42 = arith.mulf %37, %41 : vector<16x32xf32>
    %43 = vector.broadcast %2 : vector<1x32xf32> to vector<16x32xf32>
    %44 = arith.mulf %42, %43 : vector<16x32xf32>
    %45 = vector.broadcast %5 : vector<1x32xf32> to vector<16x32xf32>
    %46 = arith.addf %44, %45 : vector<16x32xf32>
    %c32 = arith.constant 32 : index
    %c0_14 = arith.constant 0 : index
    %47 = vector.load %arg0[%c32, %c0_14] : memref<36x32xf32, #tpu.memory_space<vmem>>, vector<2x32xf32>
    %cst_15 = arith.constant dense<0.000000e+00> : vector<2xf32>
    %48 = vector.multi_reduction <add>, %47, %cst_15 [1] : vector<2x32xf32> to vector<2xf32>
    %49 = vector.shape_cast %48 : vector<2xf32> to vector<2x1xf32>
    %cst_16 = arith.constant 3.200000e+01 : f32
    %50 = vector.broadcast %cst_16 : f32 to vector<2x1xf32>
    %51 = arith.divf %49, %50 : vector<2x1xf32>
    %52 = vector.broadcast %51 : vector<2x1xf32> to vector<2x32xf32>
    %53 = arith.subf %47, %52 : vector<2x32xf32>
    %54 = arith.mulf %53, %53 : vector<2x32xf32>
    %cst_17 = arith.constant dense<0.000000e+00> : vector<2xf32>
    %55 = vector.multi_reduction <add>, %54, %cst_17 [1] : vector<2x32xf32> to vector<2xf32>
    %56 = vector.shape_cast %55 : vector<2xf32> to vector<2x1xf32>
    %cst_18 = arith.constant 3.200000e+01 : f32
    %57 = vector.broadcast %cst_18 : f32 to vector<2x1xf32>
    %58 = arith.divf %56, %57 : vector<2x1xf32>
    %59 = vector.broadcast %51 : vector<2x1xf32> to vector<2x32xf32>
    %60 = arith.subf %47, %59 : vector<2x32xf32>
    %cst_19 = arith.constant 9.99999996E-13 : f32
    %61 = vector.broadcast %cst_19 : f32 to vector<2x1xf32>
    %62 = arith.addf %58, %61 : vector<2x1xf32>
    %63 = math.rsqrt %62 : vector<2x1xf32>
    %64 = vector.broadcast %63 : vector<2x1xf32> to vector<2x32xf32>
    %65 = arith.mulf %60, %64 : vector<2x32xf32>
    %66 = vector.broadcast %2 : vector<1x32xf32> to vector<2x32xf32>
    %67 = arith.mulf %65, %66 : vector<2x32xf32>
    %68 = vector.broadcast %5 : vector<1x32xf32> to vector<2x32xf32>
    %69 = arith.addf %67, %68 : vector<2x32xf32>
    %cst_20 = arith.constant dense<0.000000e+00> : vector<16x64xf32>
    %70 = tpu.matmul %46, %22, %cst_20 {dimension_numbers = #tpu.dot_dimension_numbers<[1], [0], [0], [1], [0, 0, 1, 1], [], []>} : vector<16x32xf32>, vector<32x64xf32>, vector<16x64xf32> -> vector<16x64xf32>
    %71 = vector.broadcast %9 : vector<1x64xf32> to vector<16x64xf32>
    %72 = arith.addf %70, %71 : vector<16x64xf32>
    %cst_21 = arith.constant dense<0.000000e+00> : vector<2x32xf32>
    %73 = tpu.matmul %69, %16, %cst_21 {dimension_numbers = #tpu.dot_dimension_numbers<[1], [0], [0], [1], [0, 0, 1, 1], [], []>} : vector<2x32xf32>, vector<32x32xf32>, vector<2x32xf32> -> vector<2x32xf32>
    %74 = vector.broadcast %8 : vector<1x32xf32> to vector<2x32xf32>
    %75 = arith.addf %73, %74 : vector<2x32xf32>
    %c0_22 = arith.constant 0 : index
    %c0_23 = arith.constant 0 : index
    %76 = vector.load %arg1[%c0_22, %c0_23] : memref<4x16xf32, #tpu.memory_space<vmem>>, vector<2x16xf32>
    %77 = vector.extract_strided_slice %75 {offsets = [0, 0], sizes = [2, 16], strides = [1, 1]} : vector<2x32xf32> to vector<2x16xf32>
    %78 = vector.extract_strided_slice %72 {offsets = [0, 0], sizes = [16, 16], strides = [1, 1]} : vector<16x64xf32> to vector<16x16xf32>
    %79 = vector.extract_strided_slice %72 {offsets = [0, 32], sizes = [16, 16], strides = [1, 1]} : vector<16x64xf32> to vector<16x16xf32>
    %cst_24 = arith.constant dense<0.000000e+00> : vector<2x16xf32>
    %80 = tpu.matmul %77, %78, %cst_24 {dimension_numbers = #tpu.dot_dimension_numbers<[1], [1], [0], [0], [0, 0, 1, 0], [], []>} : vector<2x16xf32>, vector<16x16xf32>, vector<2x16xf32> -> vector<2x16xf32>
    %cst_25 = arith.constant 2.500000e-01 : f32
    %81 = vector.broadcast %cst_25 : f32 to vector<2x16xf32>
    %82 = arith.mulf %80, %81 : vector<2x16xf32>
    %83 = arith.addf %82, %76 : vector<2x16xf32>
    %cst_26 = arith.constant dense<0xFF800000> : vector<2xf32>
    %84 = vector.multi_reduction <maximumf>, %83, %cst_26 [1] : vector<2x16xf32> to vector<2xf32>
    %85 = vector.shape_cast %84 : vector<2xf32> to vector<2x1xf32>
    %86 = vector.broadcast %85 : vector<2x1xf32> to vector<2x16xf32>
    %87 = arith.subf %83, %86 : vector<2x16xf32>
    %88 = math.exp %87 : vector<2x16xf32>
    %cst_27 = arith.constant dense<0.000000e+00> : vector<2xf32>
    %89 = vector.multi_reduction <add>, %88, %cst_27 [1] : vector<2x16xf32> to vector<2xf32>
    %90 = vector.shape_cast %89 : vector<2xf32> to vector<2x1xf32>
    %91 = vector.broadcast %90 : vector<2x1xf32> to vector<2x16xf32>
    %92 = arith.divf %88, %91 : vector<2x16xf32>
    %cst_28 = arith.constant dense<0.000000e+00> : vector<2x16xf32>
    %93 = tpu.matmul %92, %79, %cst_28 {dimension_numbers = #tpu.dot_dimension_numbers<[1], [0], [0], [1], [0, 0, 1, 1], [], []>} : vector<2x16xf32>, vector<16x16xf32>, vector<2x16xf32> -> vector<2x16xf32>
    %94 = vector.extract_strided_slice %75 {offsets = [0, 16], sizes = [2, 16], strides = [1, 1]} : vector<2x32xf32> to vector<2x16xf32>
    %95 = vector.extract_strided_slice %72 {offsets = [0, 16], sizes = [16, 16], strides = [1, 1]} : vector<16x64xf32> to vector<16x16xf32>
    %96 = vector.extract_strided_slice %72 {offsets = [0, 48], sizes = [16, 16], strides = [1, 1]} : vector<16x64xf32> to vector<16x16xf32>
    %cst_29 = arith.constant dense<0.000000e+00> : vector<2x16xf32>
    %97 = tpu.matmul %94, %95, %cst_29 {dimension_numbers = #tpu.dot_dimension_numbers<[1], [1], [0], [0], [0, 0, 1, 0], [], []>} : vector<2x16xf32>, vector<16x16xf32>, vector<2x16xf32> -> vector<2x16xf32>
    %cst_30 = arith.constant 2.500000e-01 : f32
    %98 = vector.broadcast %cst_30 : f32 to vector<2x16xf32>
    %99 = arith.mulf %97, %98 : vector<2x16xf32>
    %100 = arith.addf %99, %76 : vector<2x16xf32>
    %cst_31 = arith.constant dense<0xFF800000> : vector<2xf32>
    %101 = vector.multi_reduction <maximumf>, %100, %cst_31 [1] : vector<2x16xf32> to vector<2xf32>
    %102 = vector.shape_cast %101 : vector<2xf32> to vector<2x1xf32>
    %103 = vector.broadcast %102 : vector<2x1xf32> to vector<2x16xf32>
    %104 = arith.subf %100, %103 : vector<2x16xf32>
    %105 = math.exp %104 : vector<2x16xf32>
    %cst_32 = arith.constant dense<0.000000e+00> : vector<2xf32>
    %106 = vector.multi_reduction <add>, %105, %cst_32 [1] : vector<2x16xf32> to vector<2xf32>
    %107 = vector.shape_cast %106 : vector<2xf32> to vector<2x1xf32>
    %108 = vector.broadcast %107 : vector<2x1xf32> to vector<2x16xf32>
    %109 = arith.divf %105, %108 : vector<2x16xf32>
    %cst_33 = arith.constant dense<0.000000e+00> : vector<2x16xf32>
    %110 = tpu.matmul %109, %96, %cst_33 {dimension_numbers = #tpu.dot_dimension_numbers<[1], [0], [0], [1], [0, 0, 1, 1], [], []>} : vector<2x16xf32>, vector<16x16xf32>, vector<2x16xf32> -> vector<2x16xf32>
    %111 = tpu.concatenate %93, %110 in 1 : vector<2x16xf32>, vector<2x16xf32> -> vector<2x32xf32>
    %cst_34 = arith.constant dense<0.000000e+00> : vector<2x32xf32>
    %112 = tpu.matmul %111, %17, %cst_34 {dimension_numbers = #tpu.dot_dimension_numbers<[1], [0], [0], [1], [0, 0, 1, 1], [], []>} : vector<2x32xf32>, vector<32x32xf32>, vector<2x32xf32> -> vector<2x32xf32>
    %113 = vector.broadcast %10 : vector<1x32xf32> to vector<2x32xf32>
    %114 = arith.addf %112, %113 : vector<2x32xf32>
    %115 = arith.addf %69, %114 : vector<2x32xf32>
    %cst_35 = arith.constant dense<0.000000e+00> : vector<2xf32>
    %116 = vector.multi_reduction <add>, %115, %cst_35 [1] : vector<2x32xf32> to vector<2xf32>
    %117 = vector.shape_cast %116 : vector<2xf32> to vector<2x1xf32>
    %cst_36 = arith.constant 3.200000e+01 : f32
    %118 = vector.broadcast %cst_36 : f32 to vector<2x1xf32>
    %119 = arith.divf %117, %118 : vector<2x1xf32>
    %120 = vector.broadcast %119 : vector<2x1xf32> to vector<2x32xf32>
    %121 = arith.subf %115, %120 : vector<2x32xf32>
    %122 = arith.mulf %121, %121 : vector<2x32xf32>
    %cst_37 = arith.constant dense<0.000000e+00> : vector<2xf32>
    %123 = vector.multi_reduction <add>, %122, %cst_37 [1] : vector<2x32xf32> to vector<2xf32>
    %124 = vector.shape_cast %123 : vector<2xf32> to vector<2x1xf32>
    %cst_38 = arith.constant 3.200000e+01 : f32
    %125 = vector.broadcast %cst_38 : f32 to vector<2x1xf32>
    %126 = arith.divf %124, %125 : vector<2x1xf32>
    %127 = vector.broadcast %119 : vector<2x1xf32> to vector<2x32xf32>
    %128 = arith.subf %115, %127 : vector<2x32xf32>
    %cst_39 = arith.constant 9.99999996E-13 : f32
    %129 = vector.broadcast %cst_39 : f32 to vector<2x1xf32>
    %130 = arith.addf %126, %129 : vector<2x1xf32>
    %131 = math.rsqrt %130 : vector<2x1xf32>
    %132 = vector.broadcast %131 : vector<2x1xf32> to vector<2x32xf32>
    %133 = arith.mulf %128, %132 : vector<2x32xf32>
    %134 = vector.broadcast %3 : vector<1x32xf32> to vector<2x32xf32>
    %135 = arith.mulf %133, %134 : vector<2x32xf32>
    %136 = vector.broadcast %6 : vector<1x32xf32> to vector<2x32xf32>
    %137 = arith.addf %135, %136 : vector<2x32xf32>
    %cst_40 = arith.constant dense<0.000000e+00> : vector<2x64xf32>
    %138 = tpu.matmul %137, %23, %cst_40 {dimension_numbers = #tpu.dot_dimension_numbers<[1], [0], [0], [1], [0, 0, 1, 1], [], []>} : vector<2x32xf32>, vector<32x64xf32>, vector<2x64xf32> -> vector<2x64xf32>
    %139 = vector.broadcast %11 : vector<1x64xf32> to vector<2x64xf32>
    %140 = arith.addf %138, %139 : vector<2x64xf32>
    %cst_41 = arith.constant 5.000000e-01 : f32
    %141 = vector.broadcast %cst_41 : f32 to vector<2x64xf32>
    %142 = arith.mulf %141, %140 : vector<2x64xf32>
    %cst_42 = arith.constant 4.471500e-02 : f32
    %143 = vector.broadcast %cst_42 : f32 to vector<2x64xf32>
    %144 = arith.mulf %143, %140 : vector<2x64xf32>
    %145 = arith.mulf %144, %140 : vector<2x64xf32>
    %146 = arith.mulf %145, %140 : vector<2x64xf32>
    %147 = arith.addf %140, %146 : vector<2x64xf32>
    %cst_43 = arith.constant 0.797884583 : f32
    %148 = vector.broadcast %cst_43 : f32 to vector<2x64xf32>
    %149 = arith.mulf %148, %147 : vector<2x64xf32>
    %150 = math.tanh %149 : vector<2x64xf32>
    %cst_44 = arith.constant 1.000000e+00 : f32
    %151 = vector.broadcast %cst_44 : f32 to vector<2x64xf32>
    %152 = arith.addf %151, %150 : vector<2x64xf32>
    %153 = arith.mulf %142, %152 : vector<2x64xf32>
    %cst_45 = arith.constant dense<0.000000e+00> : vector<2x32xf32>
    %154 = tpu.matmul %153, %19, %cst_45 {dimension_numbers = #tpu.dot_dimension_numbers<[1], [0], [0], [1], [0, 0, 1, 1], [], []>} : vector<2x64xf32>, vector<64x32xf32>, vector<2x32xf32> -> vector<2x32xf32>
    %155 = vector.broadcast %12 : vector<1x32xf32> to vector<2x32xf32>
    %156 = arith.addf %154, %155 : vector<2x32xf32>
    %157 = arith.addf %137, %156 : vector<2x32xf32>
    %cst_46 = arith.constant dense<0.000000e+00> : vector<2xf32>
    %158 = vector.multi_reduction <add>, %157, %cst_46 [1] : vector<2x32xf32> to vector<2xf32>
    %159 = vector.shape_cast %158 : vector<2xf32> to vector<2x1xf32>
    %cst_47 = arith.constant 3.200000e+01 : f32
    %160 = vector.broadcast %cst_47 : f32 to vector<2x1xf32>
    %161 = arith.divf %159, %160 : vector<2x1xf32>
    %162 = vector.broadcast %161 : vector<2x1xf32> to vector<2x32xf32>
    %163 = arith.subf %157, %162 : vector<2x32xf32>
    %164 = arith.mulf %163, %163 : vector<2x32xf32>
    %cst_48 = arith.constant dense<0.000000e+00> : vector<2xf32>
    %165 = vector.multi_reduction <add>, %164, %cst_48 [1] : vector<2x32xf32> to vector<2xf32>
    %166 = vector.shape_cast %165 : vector<2xf32> to vector<2x1xf32>
    %cst_49 = arith.constant 3.200000e+01 : f32
    %167 = vector.broadcast %cst_49 : f32 to vector<2x1xf32>
    %168 = arith.divf %166, %167 : vector<2x1xf32>
    %169 = vector.broadcast %161 : vector<2x1xf32> to vector<2x32xf32>
    %170 = arith.subf %157, %169 : vector<2x32xf32>
    %cst_50 = arith.constant 9.99999996E-13 : f32
    %171 = vector.broadcast %cst_50 : f32 to vector<2x1xf32>
    %172 = arith.addf %168, %171 : vector<2x1xf32>
    %173 = math.rsqrt %172 : vector<2x1xf32>
    %174 = vector.broadcast %173 : vector<2x1xf32> to vector<2x32xf32>
    %175 = arith.mulf %170, %174 : vector<2x32xf32>
    %176 = vector.broadcast %4 : vector<1x32xf32> to vector<2x32xf32>
    %177 = arith.mulf %175, %176 : vector<2x32xf32>
    %178 = vector.broadcast %7 : vector<1x32xf32> to vector<2x32xf32>
    %179 = arith.addf %177, %178 : vector<2x32xf32>
    %cst_51 = arith.constant dense<0.000000e+00> : vector<2x32xf32>
    %180 = tpu.matmul %179, %18, %cst_51 {dimension_numbers = #tpu.dot_dimension_numbers<[1], [0], [0], [1], [0, 0, 1, 1], [], []>} : vector<2x32xf32>, vector<32x32xf32>, vector<2x32xf32> -> vector<2x32xf32>
    %181 = vector.broadcast %13 : vector<1x32xf32> to vector<2x32xf32>
    %182 = arith.addf %180, %181 : vector<2x32xf32>
    %183 = math.tanh %182 : vector<2x32xf32>
    %c1 = arith.constant 1 : index
    %c0_52 = arith.constant 0 : index
    %c0_53 = arith.constant 0 : index
    %184 = vector.load %arg4[%c1, %c0_52, %c0_53] : memref<2x8x128xf32, #tpu.memory_space<vmem>>, vector<1x8x128xf32>
    %185 = vector.shape_cast %184 : vector<1x8x128xf32> to vector<8x128xf32>
    %186 = vector.extract_strided_slice %185 {offsets = [0, 0], sizes = [1, 32], strides = [1, 1]} : vector<8x128xf32> to vector<1x32xf32>
    %187 = vector.extract_strided_slice %185 {offsets = [0, 32], sizes = [1, 32], strides = [1, 1]} : vector<8x128xf32> to vector<1x32xf32>
    %188 = vector.extract_strided_slice %185 {offsets = [0, 64], sizes = [1, 32], strides = [1, 1]} : vector<8x128xf32> to vector<1x32xf32>
    %189 = vector.extract_strided_slice %185 {offsets = [1, 0], sizes = [1, 32], strides = [1, 1]} : vector<8x128xf32> to vector<1x32xf32>
    %190 = vector.extract_strided_slice %185 {offsets = [1, 32], sizes = [1, 32], strides = [1, 1]} : vector<8x128xf32> to vector<1x32xf32>
    %191 = vector.extract_strided_slice %185 {offsets = [1, 64], sizes = [1, 32], strides = [1, 1]} : vector<8x128xf32> to vector<1x32xf32>
    %192 = vector.extract_strided_slice %185 {offsets = [2, 0], sizes = [1, 32], strides = [1, 1]} : vector<8x128xf32> to vector<1x32xf32>
    %193 = vector.extract_strided_slice %185 {offsets = [2, 32], sizes = [1, 64], strides = [1, 1]} : vector<8x128xf32> to vector<1x64xf32>
    %194 = vector.extract_strided_slice %185 {offsets = [2, 96], sizes = [1, 32], strides = [1, 1]} : vector<8x128xf32> to vector<1x32xf32>
    %195 = vector.extract_strided_slice %185 {offsets = [3, 0], sizes = [1, 64], strides = [1, 1]} : vector<8x128xf32> to vector<1x64xf32>
    %196 = vector.extract_strided_slice %185 {offsets = [3, 64], sizes = [1, 32], strides = [1, 1]} : vector<8x128xf32> to vector<1x32xf32>
    %197 = vector.extract_strided_slice %185 {offsets = [3, 96], sizes = [1, 32], strides = [1, 1]} : vector<8x128xf32> to vector<1x32xf32>
    %c1_54 = arith.constant 1 : index
    %c0_55 = arith.constant 0 : index
    %c0_56 = arith.constant 0 : index
    %198 = vector.load %arg2[%c1_54, %c0_55, %c0_56] : memref<2x160x32xf32, #tpu.memory_space<vmem>>, vector<1x160x32xf32>
    %199 = vector.shape_cast %198 : vector<1x160x32xf32> to vector<160x32xf32>
    %200 = vector.extract_strided_slice %199 {offsets = [0, 0], sizes = [32, 32], strides = [1, 1]} : vector<160x32xf32> to vector<32x32xf32>
    %201 = vector.extract_strided_slice %199 {offsets = [32, 0], sizes = [32, 32], strides = [1, 1]} : vector<160x32xf32> to vector<32x32xf32>
    %202 = vector.extract_strided_slice %199 {offsets = [64, 0], sizes = [32, 32], strides = [1, 1]} : vector<160x32xf32> to vector<32x32xf32>
    %203 = vector.extract_strided_slice %199 {offsets = [96, 0], sizes = [64, 32], strides = [1, 1]} : vector<160x32xf32> to vector<64x32xf32>
    %c1_57 = arith.constant 1 : index
    %c0_58 = arith.constant 0 : index
    %c0_59 = arith.constant 0 : index
    %204 = vector.load %arg3[%c1_57, %c0_58, %c0_59] : memref<2x64x64xf32, #tpu.memory_space<vmem>>, vector<1x64x64xf32>
    %205 = vector.shape_cast %204 : vector<1x64x64xf32> to vector<64x64xf32>
    %206 = vector.extract_strided_slice %205 {offsets = [0, 0], sizes = [32, 64], strides = [1, 1]} : vector<64x64xf32> to vector<32x64xf32>
    %207 = vector.extract_strided_slice %205 {offsets = [32, 0], sizes = [32, 64], strides = [1, 1]} : vector<64x64xf32> to vector<32x64xf32>
    %c16 = arith.constant 16 : index
    %c0_60 = arith.constant 0 : index
    %208 = vector.load %arg0[%c16, %c0_60] : memref<36x32xf32, #tpu.memory_space<vmem>>, vector<16x32xf32>
    %cst_61 = arith.constant dense<0.000000e+00> : vector<16xf32>
    %209 = vector.multi_reduction <add>, %208, %cst_61 [1] : vector<16x32xf32> to vector<16xf32>
    %210 = vector.shape_cast %209 : vector<16xf32> to vector<16x1xf32>
    %cst_62 = arith.constant 3.200000e+01 : f32
    %211 = vector.broadcast %cst_62 : f32 to vector<16x1xf32>
    %212 = arith.divf %210, %211 : vector<16x1xf32>
    %213 = vector.broadcast %212 : vector<16x1xf32> to vector<16x32xf32>
    %214 = arith.subf %208, %213 : vector<16x32xf32>
    %215 = arith.mulf %214, %214 : vector<16x32xf32>
    %cst_63 = arith.constant dense<0.000000e+00> : vector<16xf32>
    %216 = vector.multi_reduction <add>, %215, %cst_63 [1] : vector<16x32xf32> to vector<16xf32>
    %217 = vector.shape_cast %216 : vector<16xf32> to vector<16x1xf32>
    %cst_64 = arith.constant 3.200000e+01 : f32
    %218 = vector.broadcast %cst_64 : f32 to vector<16x1xf32>
    %219 = arith.divf %217, %218 : vector<16x1xf32>
    %220 = vector.broadcast %212 : vector<16x1xf32> to vector<16x32xf32>
    %221 = arith.subf %208, %220 : vector<16x32xf32>
    %cst_65 = arith.constant 9.99999996E-13 : f32
    %222 = vector.broadcast %cst_65 : f32 to vector<16x1xf32>
    %223 = arith.addf %219, %222 : vector<16x1xf32>
    %224 = math.rsqrt %223 : vector<16x1xf32>
    %225 = vector.broadcast %224 : vector<16x1xf32> to vector<16x32xf32>
    %226 = arith.mulf %221, %225 : vector<16x32xf32>
    %227 = vector.broadcast %186 : vector<1x32xf32> to vector<16x32xf32>
    %228 = arith.mulf %226, %227 : vector<16x32xf32>
    %229 = vector.broadcast %189 : vector<1x32xf32> to vector<16x32xf32>
    %230 = arith.addf %228, %229 : vector<16x32xf32>
    %c34 = arith.constant 34 : index
    %c0_66 = arith.constant 0 : index
    %231 = vector.load %arg0[%c34, %c0_66] : memref<36x32xf32, #tpu.memory_space<vmem>>, vector<2x32xf32>
    %cst_67 = arith.constant dense<0.000000e+00> : vector<2xf32>
    %232 = vector.multi_reduction <add>, %231, %cst_67 [1] : vector<2x32xf32> to vector<2xf32>
    %233 = vector.shape_cast %232 : vector<2xf32> to vector<2x1xf32>
    %cst_68 = arith.constant 3.200000e+01 : f32
    %234 = vector.broadcast %cst_68 : f32 to vector<2x1xf32>
    %235 = arith.divf %233, %234 : vector<2x1xf32>
    %236 = vector.broadcast %235 : vector<2x1xf32> to vector<2x32xf32>
    %237 = arith.subf %231, %236 : vector<2x32xf32>
    %238 = arith.mulf %237, %237 : vector<2x32xf32>
    %cst_69 = arith.constant dense<0.000000e+00> : vector<2xf32>
    %239 = vector.multi_reduction <add>, %238, %cst_69 [1] : vector<2x32xf32> to vector<2xf32>
    %240 = vector.shape_cast %239 : vector<2xf32> to vector<2x1xf32>
    %cst_70 = arith.constant 3.200000e+01 : f32
    %241 = vector.broadcast %cst_70 : f32 to vector<2x1xf32>
    %242 = arith.divf %240, %241 : vector<2x1xf32>
    %243 = vector.broadcast %235 : vector<2x1xf32> to vector<2x32xf32>
    %244 = arith.subf %231, %243 : vector<2x32xf32>
    %cst_71 = arith.constant 9.99999996E-13 : f32
    %245 = vector.broadcast %cst_71 : f32 to vector<2x1xf32>
    %246 = arith.addf %242, %245 : vector<2x1xf32>
    %247 = math.rsqrt %246 : vector<2x1xf32>
    %248 = vector.broadcast %247 : vector<2x1xf32> to vector<2x32xf32>
    %249 = arith.mulf %244, %248 : vector<2x32xf32>
    %250 = vector.broadcast %186 : vector<1x32xf32> to vector<2x32xf32>
    %251 = arith.mulf %249, %250 : vector<2x32xf32>
    %252 = vector.broadcast %189 : vector<1x32xf32> to vector<2x32xf32>
    %253 = arith.addf %251, %252 : vector<2x32xf32>
    %cst_72 = arith.constant dense<0.000000e+00> : vector<16x64xf32>
    %254 = tpu.matmul %230, %206, %cst_72 {dimension_numbers = #tpu.dot_dimension_numbers<[1], [0], [0], [1], [0, 0, 1, 1], [], []>} : vector<16x32xf32>, vector<32x64xf32>, vector<16x64xf32> -> vector<16x64xf32>
    %255 = vector.broadcast %193 : vector<1x64xf32> to vector<16x64xf32>
    %256 = arith.addf %254, %255 : vector<16x64xf32>
    %cst_73 = arith.constant dense<0.000000e+00> : vector<2x32xf32>
    %257 = tpu.matmul %253, %200, %cst_73 {dimension_numbers = #tpu.dot_dimension_numbers<[1], [0], [0], [1], [0, 0, 1, 1], [], []>} : vector<2x32xf32>, vector<32x32xf32>, vector<2x32xf32> -> vector<2x32xf32>
    %258 = vector.broadcast %192 : vector<1x32xf32> to vector<2x32xf32>
    %259 = arith.addf %257, %258 : vector<2x32xf32>
    %c2 = arith.constant 2 : index
    %c0_74 = arith.constant 0 : index
    %260 = vector.load %arg1[%c2, %c0_74] : memref<4x16xf32, #tpu.memory_space<vmem>>, vector<2x16xf32>
    %261 = vector.extract_strided_slice %259 {offsets = [0, 0], sizes = [2, 16], strides = [1, 1]} : vector<2x32xf32> to vector<2x16xf32>
    %262 = vector.extract_strided_slice %256 {offsets = [0, 0], sizes = [16, 16], strides = [1, 1]} : vector<16x64xf32> to vector<16x16xf32>
    %263 = vector.extract_strided_slice %256 {offsets = [0, 32], sizes = [16, 16], strides = [1, 1]} : vector<16x64xf32> to vector<16x16xf32>
    %cst_75 = arith.constant dense<0.000000e+00> : vector<2x16xf32>
    %264 = tpu.matmul %261, %262, %cst_75 {dimension_numbers = #tpu.dot_dimension_numbers<[1], [1], [0], [0], [0, 0, 1, 0], [], []>} : vector<2x16xf32>, vector<16x16xf32>, vector<2x16xf32> -> vector<2x16xf32>
    %cst_76 = arith.constant 2.500000e-01 : f32
    %265 = vector.broadcast %cst_76 : f32 to vector<2x16xf32>
    %266 = arith.mulf %264, %265 : vector<2x16xf32>
    %267 = arith.addf %266, %260 : vector<2x16xf32>
    %cst_77 = arith.constant dense<0xFF800000> : vector<2xf32>
    %268 = vector.multi_reduction <maximumf>, %267, %cst_77 [1] : vector<2x16xf32> to vector<2xf32>
    %269 = vector.shape_cast %268 : vector<2xf32> to vector<2x1xf32>
    %270 = vector.broadcast %269 : vector<2x1xf32> to vector<2x16xf32>
    %271 = arith.subf %267, %270 : vector<2x16xf32>
    %272 = math.exp %271 : vector<2x16xf32>
    %cst_78 = arith.constant dense<0.000000e+00> : vector<2xf32>
    %273 = vector.multi_reduction <add>, %272, %cst_78 [1] : vector<2x16xf32> to vector<2xf32>
    %274 = vector.shape_cast %273 : vector<2xf32> to vector<2x1xf32>
    %275 = vector.broadcast %274 : vector<2x1xf32> to vector<2x16xf32>
    %276 = arith.divf %272, %275 : vector<2x16xf32>
    %cst_79 = arith.constant dense<0.000000e+00> : vector<2x16xf32>
    %277 = tpu.matmul %276, %263, %cst_79 {dimension_numbers = #tpu.dot_dimension_numbers<[1], [0], [0], [1], [0, 0, 1, 1], [], []>} : vector<2x16xf32>, vector<16x16xf32>, vector<2x16xf32> -> vector<2x16xf32>
    %278 = vector.extract_strided_slice %259 {offsets = [0, 16], sizes = [2, 16], strides = [1, 1]} : vector<2x32xf32> to vector<2x16xf32>
    %279 = vector.extract_strided_slice %256 {offsets = [0, 16], sizes = [16, 16], strides = [1, 1]} : vector<16x64xf32> to vector<16x16xf32>
    %280 = vector.extract_strided_slice %256 {offsets = [0, 48], sizes = [16, 16], strides = [1, 1]} : vector<16x64xf32> to vector<16x16xf32>
    %cst_80 = arith.constant dense<0.000000e+00> : vector<2x16xf32>
    %281 = tpu.matmul %278, %279, %cst_80 {dimension_numbers = #tpu.dot_dimension_numbers<[1], [1], [0], [0], [0, 0, 1, 0], [], []>} : vector<2x16xf32>, vector<16x16xf32>, vector<2x16xf32> -> vector<2x16xf32>
    %cst_81 = arith.constant 2.500000e-01 : f32
    %282 = vector.broadcast %cst_81 : f32 to vector<2x16xf32>
    %283 = arith.mulf %281, %282 : vector<2x16xf32>
    %284 = arith.addf %283, %260 : vector<2x16xf32>
    %cst_82 = arith.constant dense<0xFF800000> : vector<2xf32>
    %285 = vector.multi_reduction <maximumf>, %284, %cst_82 [1] : vector<2x16xf32> to vector<2xf32>
    %286 = vector.shape_cast %285 : vector<2xf32> to vector<2x1xf32>
    %287 = vector.broadcast %286 : vector<2x1xf32> to vector<2x16xf32>
    %288 = arith.subf %284, %287 : vector<2x16xf32>
    %289 = math.exp %288 : vector<2x16xf32>
    %cst_83 = arith.constant dense<0.000000e+00> : vector<2xf32>
    %290 = vector.multi_reduction <add>, %289, %cst_83 [1] : vector<2x16xf32> to vector<2xf32>
    %291 = vector.shape_cast %290 : vector<2xf32> to vector<2x1xf32>
    %292 = vector.broadcast %291 : vector<2x1xf32> to vector<2x16xf32>
    %293 = arith.divf %289, %292 : vector<2x16xf32>
    %cst_84 = arith.constant dense<0.000000e+00> : vector<2x16xf32>
    %294 = tpu.matmul %293, %280, %cst_84 {dimension_numbers = #tpu.dot_dimension_numbers<[1], [0], [0], [1], [0, 0, 1, 1], [], []>} : vector<2x16xf32>, vector<16x16xf32>, vector<2x16xf32> -> vector<2x16xf32>
    %295 = tpu.concatenate %277, %294 in 1 : vector<2x16xf32>, vector<2x16xf32> -> vector<2x32xf32>
    %cst_85 = arith.constant dense<0.000000e+00> : vector<2x32xf32>
    %296 = tpu.matmul %295, %201, %cst_85 {dimension_numbers = #tpu.dot_dimension_numbers<[1], [0], [0], [1], [0, 0, 1, 1], [], []>} : vector<2x32xf32>, vector<32x32xf32>, vector<2x32xf32> -> vector<2x32xf32>
    %297 = vector.broadcast %194 : vector<1x32xf32> to vector<2x32xf32>
    %298 = arith.addf %296, %297 : vector<2x32xf32>
    %299 = arith.addf %253, %298 : vector<2x32xf32>
    %cst_86 = arith.constant dense<0.000000e+00> : vector<2xf32>
    %300 = vector.multi_reduction <add>, %299, %cst_86 [1] : vector<2x32xf32> to vector<2xf32>
    %301 = vector.shape_cast %300 : vector<2xf32> to vector<2x1xf32>
    %cst_87 = arith.constant 3.200000e+01 : f32
    %302 = vector.broadcast %cst_87 : f32 to vector<2x1xf32>
    %303 = arith.divf %301, %302 : vector<2x1xf32>
    %304 = vector.broadcast %303 : vector<2x1xf32> to vector<2x32xf32>
    %305 = arith.subf %299, %304 : vector<2x32xf32>
    %306 = arith.mulf %305, %305 : vector<2x32xf32>
    %cst_88 = arith.constant dense<0.000000e+00> : vector<2xf32>
    %307 = vector.multi_reduction <add>, %306, %cst_88 [1] : vector<2x32xf32> to vector<2xf32>
    %308 = vector.shape_cast %307 : vector<2xf32> to vector<2x1xf32>
    %cst_89 = arith.constant 3.200000e+01 : f32
    %309 = vector.broadcast %cst_89 : f32 to vector<2x1xf32>
    %310 = arith.divf %308, %309 : vector<2x1xf32>
    %311 = vector.broadcast %303 : vector<2x1xf32> to vector<2x32xf32>
    %312 = arith.subf %299, %311 : vector<2x32xf32>
    %cst_90 = arith.constant 9.99999996E-13 : f32
    %313 = vector.broadcast %cst_90 : f32 to vector<2x1xf32>
    %314 = arith.addf %310, %313 : vector<2x1xf32>
    %315 = math.rsqrt %314 : vector<2x1xf32>
    %316 = vector.broadcast %315 : vector<2x1xf32> to vector<2x32xf32>
    %317 = arith.mulf %312, %316 : vector<2x32xf32>
    %318 = vector.broadcast %187 : vector<1x32xf32> to vector<2x32xf32>
    %319 = arith.mulf %317, %318 : vector<2x32xf32>
    %320 = vector.broadcast %190 : vector<1x32xf32> to vector<2x32xf32>
    %321 = arith.addf %319, %320 : vector<2x32xf32>
    %cst_91 = arith.constant dense<0.000000e+00> : vector<2x64xf32>
    %322 = tpu.matmul %321, %207, %cst_91 {dimension_numbers = #tpu.dot_dimension_numbers<[1], [0], [0], [1], [0, 0, 1, 1], [], []>} : vector<2x32xf32>, vector<32x64xf32>, vector<2x64xf32> -> vector<2x64xf32>
    %323 = vector.broadcast %195 : vector<1x64xf32> to vector<2x64xf32>
    %324 = arith.addf %322, %323 : vector<2x64xf32>
    %cst_92 = arith.constant 5.000000e-01 : f32
    %325 = vector.broadcast %cst_92 : f32 to vector<2x64xf32>
    %326 = arith.mulf %325, %324 : vector<2x64xf32>
    %cst_93 = arith.constant 4.471500e-02 : f32
    %327 = vector.broadcast %cst_93 : f32 to vector<2x64xf32>
    %328 = arith.mulf %327, %324 : vector<2x64xf32>
    %329 = arith.mulf %328, %324 : vector<2x64xf32>
    %330 = arith.mulf %329, %324 : vector<2x64xf32>
    %331 = arith.addf %324, %330 : vector<2x64xf32>
    %cst_94 = arith.constant 0.797884583 : f32
    %332 = vector.broadcast %cst_94 : f32 to vector<2x64xf32>
    %333 = arith.mulf %332, %331 : vector<2x64xf32>
    %334 = math.tanh %333 : vector<2x64xf32>
    %cst_95 = arith.constant 1.000000e+00 : f32
    %335 = vector.broadcast %cst_95 : f32 to vector<2x64xf32>
    %336 = arith.addf %335, %334 : vector<2x64xf32>
    %337 = arith.mulf %326, %336 : vector<2x64xf32>
    %cst_96 = arith.constant dense<0.000000e+00> : vector<2x32xf32>
    %338 = tpu.matmul %337, %203, %cst_96 {dimension_numbers = #tpu.dot_dimension_numbers<[1], [0], [0], [1], [0, 0, 1, 1], [], []>} : vector<2x64xf32>, vector<64x32xf32>, vector<2x32xf32> -> vector<2x32xf32>
    %339 = vector.broadcast %196 : vector<1x32xf32> to vector<2x32xf32>
    %340 = arith.addf %338, %339 : vector<2x32xf32>
    %341 = arith.addf %321, %340 : vector<2x32xf32>
    %cst_97 = arith.constant dense<0.000000e+00> : vector<2xf32>
    %342 = vector.multi_reduction <add>, %341, %cst_97 [1] : vector<2x32xf32> to vector<2xf32>
    %343 = vector.shape_cast %342 : vector<2xf32> to vector<2x1xf32>
    %cst_98 = arith.constant 3.200000e+01 : f32
    %344 = vector.broadcast %cst_98 : f32 to vector<2x1xf32>
    %345 = arith.divf %343, %344 : vector<2x1xf32>
    %346 = vector.broadcast %345 : vector<2x1xf32> to vector<2x32xf32>
    %347 = arith.subf %341, %346 : vector<2x32xf32>
    %348 = arith.mulf %347, %347 : vector<2x32xf32>
    %cst_99 = arith.constant dense<0.000000e+00> : vector<2xf32>
    %349 = vector.multi_reduction <add>, %348, %cst_99 [1] : vector<2x32xf32> to vector<2xf32>
    %350 = vector.shape_cast %349 : vector<2xf32> to vector<2x1xf32>
    %cst_100 = arith.constant 3.200000e+01 : f32
    %351 = vector.broadcast %cst_100 : f32 to vector<2x1xf32>
    %352 = arith.divf %350, %351 : vector<2x1xf32>
    %353 = vector.broadcast %345 : vector<2x1xf32> to vector<2x32xf32>
    %354 = arith.subf %341, %353 : vector<2x32xf32>
    %cst_101 = arith.constant 9.99999996E-13 : f32
    %355 = vector.broadcast %cst_101 : f32 to vector<2x1xf32>
    %356 = arith.addf %352, %355 : vector<2x1xf32>
    %357 = math.rsqrt %356 : vector<2x1xf32>
    %358 = vector.broadcast %357 : vector<2x1xf32> to vector<2x32xf32>
    %359 = arith.mulf %354, %358 : vector<2x32xf32>
    %360 = vector.broadcast %188 : vector<1x32xf32> to vector<2x32xf32>
    %361 = arith.mulf %359, %360 : vector<2x32xf32>
    %362 = vector.broadcast %191 : vector<1x32xf32> to vector<2x32xf32>
    %363 = arith.addf %361, %362 : vector<2x32xf32>
    %cst_102 = arith.constant dense<0.000000e+00> : vector<2x32xf32>
    %364 = tpu.matmul %363, %202, %cst_102 {dimension_numbers = #tpu.dot_dimension_numbers<[1], [0], [0], [1], [0, 0, 1, 1], [], []>} : vector<2x32xf32>, vector<32x32xf32>, vector<2x32xf32> -> vector<2x32xf32>
    %365 = vector.broadcast %197 : vector<1x32xf32> to vector<2x32xf32>
    %366 = arith.addf %364, %365 : vector<2x32xf32>
    %367 = math.tanh %366 : vector<2x32xf32>
    %cst_103 = arith.constant dense<0.000000e+00> : vector<2x2xf32>
    %368 = tpu.matmul %367, %183, %cst_103 {dimension_numbers = #tpu.dot_dimension_numbers<[1], [1], [0], [0], [0, 0, 1, 0], [], []>} : vector<2x32xf32>, vector<2x32xf32>, vector<2x2xf32> -> vector<2x2xf32>
    %cst_104 = arith.constant dense<0xFF800000> : vector<2xf32>
    %369 = vector.multi_reduction <maximumf>, %368, %cst_104 [1] : vector<2x2xf32> to vector<2xf32>
    %370 = vector.shape_cast %369 : vector<2xf32> to vector<2x1xf32>
    %371 = vector.broadcast %370 : vector<2x1xf32> to vector<2x2xf32>
    %372 = arith.subf %368, %371 : vector<2x2xf32>
    %373 = math.exp %372 : vector<2x2xf32>
    %cst_105 = arith.constant dense<0.000000e+00> : vector<2xf32>
    %374 = vector.multi_reduction <add>, %373, %cst_105 [1] : vector<2x2xf32> to vector<2xf32>
    %375 = vector.shape_cast %374 : vector<2xf32> to vector<2x1xf32>
    %376 = math.log %375 : vector<2x1xf32>
    %377 = arith.addf %370, %376 : vector<2x1xf32>
    %378 = vector.broadcast %377 : vector<2x1xf32> to vector<2x2xf32>
    %379 = arith.subf %368, %378 : vector<2x2xf32>
    %cst_106 = arith.constant 0.000000e+00 : f32
    %380 = vector.broadcast %cst_106 : f32 to vector<1x1xf32>
    %381 = tpu.iota {dimensions = array<i32: 1>} : vector<1x2xi32>
    %c0_107 = arith.constant 0 : index
    %382 = memref.load %arg5[%c0_107] : memref<2xi32, #tpu.memory_space<smem>>
    %383 = vector.broadcast %382 : i32 to vector<1x2xi32>
    %384 = arith.cmpi eq, %381, %383 : vector<1x2xi32>
    %385 = vector.extract_strided_slice %379 {offsets = [0, 0], sizes = [1, 2], strides = [1, 1]} : vector<2x2xf32> to vector<1x2xf32>
    %cst_108 = arith.constant 0.000000e+00 : f32
    %386 = vector.broadcast %cst_108 : f32 to vector<1x2xf32>
    %387 = arith.select %384, %385, %386 : vector<1x2xi1>, vector<1x2xf32>
    %cst_109 = arith.constant dense<0.000000e+00> : vector<1xf32>
    %388 = vector.multi_reduction <add>, %387, %cst_109 [1] : vector<1x2xf32> to vector<1xf32>
    %389 = vector.shape_cast %388 : vector<1xf32> to vector<1x1xf32>
    %390 = arith.addf %380, %389 : vector<1x1xf32>
    %c1_110 = arith.constant 1 : index
    %391 = memref.load %arg5[%c1_110] : memref<2xi32, #tpu.memory_space<smem>>
    %392 = vector.broadcast %391 : i32 to vector<1x2xi32>
    %393 = arith.cmpi eq, %381, %392 : vector<1x2xi32>
    %394 = vector.extract_strided_slice %379 {offsets = [1, 0], sizes = [1, 2], strides = [1, 1]} : vector<2x2xf32> to vector<1x2xf32>
    %cst_111 = arith.constant 0.000000e+00 : f32
    %395 = vector.broadcast %cst_111 : f32 to vector<1x2xf32>
    %396 = arith.select %393, %394, %395 : vector<1x2xi1>, vector<1x2xf32>
    %cst_112 = arith.constant dense<0.000000e+00> : vector<1xf32>
    %397 = vector.multi_reduction <add>, %396, %cst_112 [1] : vector<1x2xf32> to vector<1xf32>
    %398 = vector.shape_cast %397 : vector<1xf32> to vector<1x1xf32>
    %399 = arith.addf %390, %398 : vector<1x1xf32>
    %cst_113 = arith.constant 0.000000e+00 : f32
    %400 = vector.broadcast %cst_113 : f32 to vector<1x1xf32>
    %401 = arith.subf %400, %399 : vector<1x1xf32>
    %cst_114 = arith.constant 2.000000e+00 : f32
    %402 = vector.broadcast %cst_114 : f32 to vector<1x1xf32>
    %403 = arith.divf %401, %402 : vector<1x1xf32>
    %404 = tpu.concatenate %183, %367 in 0 : vector<2x32xf32>, vector<2x32xf32> -> vector<4x32xf32>
    %cst_115 = arith.constant 0.000000e+00 : f32
    %405 = vector.broadcast %cst_115 : f32 to vector<4x96xf32>
    %406 = tpu.concatenate %404, %405 in 1 : vector<4x32xf32>, vector<4x96xf32> -> vector<4x128xf32>
    %cst_116 = arith.constant 0.000000e+00 : f32
    %407 = vector.broadcast %cst_116 : f32 to vector<2x126xf32>
    %408 = tpu.concatenate %368, %407 in 1 : vector<2x2xf32>, vector<2x126xf32> -> vector<2x128xf32>
    %cst_117 = arith.constant 0.000000e+00 : f32
    %409 = vector.broadcast %cst_117 : f32 to vector<1x127xf32>
    %410 = tpu.concatenate %403, %409 in 1 : vector<1x1xf32>, vector<1x127xf32> -> vector<1x128xf32>
    %cst_118 = arith.constant 0.000000e+00 : f32
    %411 = vector.broadcast %cst_118 : f32 to vector<1x128xf32>
    %412 = tpu.concatenate %406, %408, %410, %411 in 0 : vector<4x128xf32>, vector<2x128xf32>, vector<1x128xf32>, vector<1x128xf32> -> vector<8x128xf32>
    %c0_119 = arith.constant 0 : index
    %c0_120 = arith.constant 0 : index
    %413 = vector.load %arg6[%c0_119, %c0_120] : memref<8x128xf32, #tpu.memory_space<vmem>>, vector<8x128xf32>
    tpu.vector_store %arg6[%c0_119, %c0_120], %412 {strides = array<i32>} : memref<8x128xf32, #tpu.memory_space<vmem>>, vector<8x128xf32>,
    return
  }
}

</mosaic_0001>

<llo_original>
// kernel: tpu_custom_call.1
$region0: #{tpu_custom_call.1}
  #allocation0 [shape = 'u32[]', space=smem, size = 0x4, offset = 0x4, fixed_abs, tag = 'smem constant byte address 0x4 - core index']
  #allocation1 [shape = 'u32[72,128]{1,0:T(1,128)}', space=vmem, size = 0x9000, scoped, tag = 'internal scratch']
  %s0 = inlined_call_operand.vmem [shape: f32[36,32], index: 0, kind: input, shape index: {}]
  %s1 = inlined_call_operand.vmem [shape: f32[4,16], index: 1, kind: input, shape index: {}]
  %s2 = inlined_call_operand.vmem [shape: f32[2,160,32], index: 2, kind: input, shape index: {}]
  %s3 = inlined_call_operand.vmem [shape: f32[2,64,64], index: 3, kind: input, shape index: {}]
  %s4 = inlined_call_operand.vmem [shape: f32[2,8,128], index: 4, kind: input, shape index: {}]
  %s5 = inlined_call_operand.vmem [shape: s32[2], index: 5, kind: input, shape index: {}]
  %s6 = inlined_call_operand.hbm [shape: f32[8,128], index: 6, kind: output, shape index: {}]
  %s7 = sld [smem:[#allocation0]]
  $region38: #{tpu_custom_call.1} parent=0
    _
  %s9 = ssub.s32 1, %s7
  %s10 = scalar_select 0, %s9, %s7
  $region1: #{tpu_custom_call.1} parent=0
    #allocation2 [shape = 'u8[512]{0}', space=smem, size = 0x200, scoped, tag = 'input window, operand 5, single buffered']
    #allocation3 [shape = 's32[1]{0}', space=sflag, size = 0x4, scoped, tag = 'scoped memory for tpu_custom_call.1']
    #allocation4 [shape = 's32[1]{0}', space=sflag, size = 0x4, scoped, tag = 'scoped memory for tpu_custom_call.1']
    #allocation5 [shape = 'u8[4096]{0}', space=vmem, size = 0x1000, scoped, tag = 'output window, operand 0, single buffered']
    %11 = vsyncpa [#allocation4], 0
    %12 = vsyncpa [#allocation3], 0
    // Predicated region
    $region2: #{tpu_custom_call.1} parent=1 // pred_check
      _
    $region3: #{tpu_custom_call.1} parent=1 // pred_check_branch
      %14 = sbr.rel (0) target = $region5
    $region4: #{tpu_custom_call.1} parent=1 // pred_region
      _
    $region5: #{tpu_custom_call.1} parent=1 // pred_fallthru
      _
    // Predicated region
    $region6: #{tpu_custom_call.1} parent=1 // pred_check
      _
    $region7: #{tpu_custom_call.1} parent=1 // pred_check_branch
      %16 = sbr.rel (0) target = $region9
    $region8: #{tpu_custom_call.1} parent=1 // pred_region
      _
    $region9: #{tpu_custom_call.1} parent=1 // pred_fallthru
      _
    // Predicated region
    $region10: #{tpu_custom_call.1} parent=1 // pred_check
      _
    $region11: #{tpu_custom_call.1} parent=1 // pred_check_branch
      %18 = sbr.rel (0) target = $region13
    $region12: #{tpu_custom_call.1} parent=1 // pred_region
      _
    $region13: #{tpu_custom_call.1} parent=1 // pred_fallthru
      _
    // Predicated region
    $region14: #{tpu_custom_call.1} parent=1 // pred_check
      _
    $region15: #{tpu_custom_call.1} parent=1 // pred_check_branch
      %20 = sbr.rel (0) target = $region17
    $region16: #{tpu_custom_call.1} parent=1 // pred_region
      _
    $region17: #{tpu_custom_call.1} parent=1 // pred_fallthru
      _
    // Predicated region
    $region18: #{tpu_custom_call.1} parent=1 // pred_check
      _
    $region19: #{tpu_custom_call.1} parent=1 // pred_check_branch
      %22 = sbr.rel (0) target = $region21
    $region20: #{tpu_custom_call.1} parent=1 // pred_region
      _
    $region21: #{tpu_custom_call.1} parent=1 // pred_fallthru
      _
    // Predicated region
    $region22: #{tpu_custom_call.1} parent=1 // pred_check
      _
    $region23: #{tpu_custom_call.1} parent=1 // pred_check_branch
      %24 = sbr.rel (0) target = $region25
    $region24: #{tpu_custom_call.1} parent=1 // pred_region
      %26 = vsyncadd [#allocation4], 0
      %s28 = sshll.u32 %s5, 4
      %s29 = int_to_ptr.vmem [resolvable:$true] %s28
      %31 = dma.vmem_to_smem %s29, 16, [#allocation2], [#allocation4]
    $region25: #{tpu_custom_call.1} parent=1 // pred_fallthru
      _
    // Predicated region
    $region26: #{tpu_custom_call.1} parent=1 // pred_check
      _
    $region27: #{tpu_custom_call.1} parent=1 // pred_check_branch
      %33 = sbr.rel (0) target = $region29
    $region28: #{tpu_custom_call.1} parent=1 // pred_region
      %35 = dma.done [#allocation4], 16
    $region29: #{tpu_custom_call.1} parent=1 // pred_fallthru
      _
    %36 = sfence
    %v37 = vld [vmem:[%s4] sm:$0xff]
    %v38 = vld [vmem:[%s2] sm:$0xff]
    %v39 = vld [vmem:[%s2 + $0x8] sm:$0xff]
    %v40 = vld [vmem:[%s2 + $0x10] sm:$0xff]
    %v41 = vld [vmem:[%s2 + $0x18] sm:$0xff]
    %v42 = vld [vmem:[%s2 + $0x20] sm:$0xff]
    %v43 = vld [vmem:[%s2 + $0x28] sm:$0xff]
    %v44 = vld [vmem:[%s2 + $0x30] sm:$0xff]
    %v45 = vld [vmem:[%s2 + $0x38] sm:$0xff]
    %v46 = vld [vmem:[%s2 + $0x40] sm:$0xff]
    %v47 = vld [vmem:[%s2 + $0x48] sm:$0xff]
    %v48 = vld [vmem:[%s2 + $0x50] sm:$0xff]
    %v49 = vld [vmem:[%s2 + $0x58] sm:$0xff]
    %v50 = vld [vmem:[%s2 + $0x60] sm:$0xff]
    %v51 = vld [vmem:[%s2 + $0x68] sm:$0xff]
    %v52 = vld [vmem:[%s2 + $0x70] sm:$0xff]
    %v53 = vld [vmem:[%s2 + $0x78] sm:$0xff]
    %v54 = vld [vmem:[%s2 + $0x80] sm:$0xff]
    %v55 = vld [vmem:[%s2 + $0x88] sm:$0xff]
    %v56 = vld [vmem:[%s2 + $0x90] sm:$0xff]
    %v57 = vld [vmem:[%s2 + $0x98] sm:$0xff]
    %v58 = vld [vmem:[%s3] sm:$0xff]
    %v59 = vld [vmem:[%s3 + $0x8] sm:$0xff]
    %v60 = vld [vmem:[%s3 + $0x10] sm:$0xff]
    %v61 = vld [vmem:[%s3 + $0x18] sm:$0xff]
    %v62 = vld [vmem:[%s3 + $0x20] sm:$0xff]
    %v63 = vld [vmem:[%s3 + $0x28] sm:$0xff]
    %v64 = vld [vmem:[%s3 + $0x30] sm:$0xff]
    %v65 = vld [vmem:[%s3 + $0x38] sm:$0xff]
    %v66 = vld [vmem:[%s0] sm:$0xff]
    %v67 = vld [vmem:[%s0 + $0x8] sm:$0xff]
    %vm68 = vcmask 261120
    %v69 = vsel %vm68, %v66, 0.0
    %70 = vadd.xlane.f32.xlu0 %v69
    %v71 = vpop.xlane.xlu0 %70
    %v72 = vsel %vm68, %v67, 0.0
    %73 = vadd.xlane.f32.xlu0 %v72
    %v74 = vpop.xlane.xlu0 %73
    %v75 = vrcp.pop 32.0
    %v76 = vmul.f32 32.0, %v75
    %v77 = vsub.f32 1.0, %v76
    %v78 = vmul.f32 %v75, %v77
    %v79 = vadd.f32 %v75, %v78
    %vm80 = vweird.f32 %v75
    %v81 = vsel %vm80, %v75, %v79
    %v82 = vmul.f32 %v71, %v81
    %v83 = vmul.f32 %v74, %v81
    %v84 = vsub.f32 %v66, %v82
    %v85 = vsub.f32 %v67, %v83
    %v86 = vmul.f32 %v84, %v84
    %v87 = vmul.f32 %v85, %v85
    %v88 = vsel %vm68, %v86, 0.0
    %89 = vadd.xlane.f32.xlu0 %v88
    %v90 = vpop.xlane.xlu0 %89
    %v91 = vsel %vm68, %v87, 0.0
    %92 = vadd.xlane.f32.xlu0 %v91
    %v93 = vpop.xlane.xlu0 %92
    %v94 = vmul.f32 %v90, %v81
    %v95 = vmul.f32 %v93, %v81
    %v96 = vadd.f32 %v94, 1e-12
    %v97 = vadd.f32 %v95, 1e-12
    %v98 = vrsqrt.pop %v96
    %v99 = vmul.f32 %v98, %v96
    %v100 = vmul.f32 %v99, %v98
    %v101 = vmul.f32 0.5, %v100
    %v102 = vsub.f32 1.5, %v101
    %v103 = vmul.f32 %v98, %v102
    %vm104 = vweird.f32 %v96
    %vm105 = vweird.f32 %v98
    %vm106 = vmor %vm104, %vm105
    %v107 = vsel %vm106, %v98, %v103
    %v108 = vrsqrt.pop %v97
    %v109 = vmul.f32 %v108, %v97
    %v110 = vmul.f32 %v109, %v108
    %v111 = vmul.f32 0.5, %v110
    %v112 = vsub.f32 1.5, %v111
    %v113 = vmul.f32 %v108, %v112
    %vm114 = vweird.f32 %v97
    %vm115 = vweird.f32 %v108
    %vm116 = vmor %vm114, %vm115
    %v117 = vsel %vm116, %v108, %v113
    %v118 = vmul.f32 %v84, %v107
    %v119 = vmul.f32 %v85, %v117
    %v120 = vperm.slane %v37, 0
    %v121 = vmul.f32 %v118, %v120
    %v122 = vmul.f32 %v119, %v120
    %v123 = vperm.slane %v37, 1
    %v124 = vadd.f32 %v121, %v123
    %v125 = vadd.f32 %v122, %v123
    %v126 = vld [vmem:[%s0 + $0x20] sm:$0x3]
    %vm127 = vcmask 254976
    %v128 = vsel %vm127, %v126, 0.0
    %129 = vadd.xlane.f32.xlu0 %v128
    %v130 = vpop.xlane.xlu0 %129
    %v131 = vmul.f32 %v130, %v81
    %v132 = vsub.f32 %v126, %v131
    %v133 = vmul.f32 %v132, %v132
    %v134 = vsel %vm127, %v133, 0.0
    %135 = vadd.xlane.f32.xlu0 %v134
    %v136 = vpop.xlane.xlu0 %135
    %v137 = vmul.f32 %v136, %v81
    %v138 = vadd.f32 %v137, 1e-12
    %v139 = vrsqrt.pop %v138
    %v140 = vmul.f32 %v139, %v138
    %v141 = vmul.f32 %v140, %v139
    %v142 = vmul.f32 0.5, %v141
    %v143 = vsub.f32 1.5, %v142
    %v144 = vmul.f32 %v139, %v143
    %vm145 = vweird.f32 %v138
    %vm146 = vweird.f32 %v139
    %vm147 = vmor %vm145, %vm146
    %v148 = vsel %vm147, %v139, %v144
    %v149 = vmul.f32 %v132, %v148
    %v150 = vmul.f32 %v149, %v120
    %v151 = vadd.f32 %v150, %v123
    %v152 = vperm.slane %v37, 2
    %154 = vrot.lane.b32.xlu0 %v152, 96
    %v155 = vpop.permute.xlu0 %154
    %v158 = vsel %vm68, %v124, 0
    %v161 = vsel %vm68, %v125, 0
    %163 = vmatpush.msra.mxu0 0.0
    %164 = vmatpush.msra.mxu0 0.0
    %165 = vmatpush.msra.mxu0 0.0
    %166 = vmatpush.msra.mxu0 0.0
    %167 = vmatpush.msra.mxu0 0.0
    %168 = vmatpush.msra.mxu0 0.0
    %169 = vmatpush.msra.mxu0 0.0
    %170 = vmatpush.msra.mxu0 0.0
    %171 = vmatpush.msra.mxu0 0.0
    %172 = vmatpush.msra.mxu0 0.0
    %173 = vmatpush.msra.mxu0 0.0
    %174 = vmatpush.msra.mxu0 0.0
    %175 = vmatpush.msra.mxu0 %v61
    %176 = vmatpush.msra.mxu0 %v60
    %177 = vmatpush.msra.mxu0 %v59
    %178 = vmatpush.msra.mxu0 %v58
    %179 = vmatmul.f32.gmra.mxu0 %v158
    %v180 = vpop.f32.mrf.mxu0
    %v181 = vadd.f32 %v155, %v180
    %182 = vmatmul.f32.gmra.mxu0 %v161
    %v183 = vpop.f32.mrf.mxu0
    %v184 = vadd.f32 %v155, %v183
    %185 = vdwg.mxu0
    %v187 = vsel %vm68, %v151, 0
    %189 = vmatpush.msra.mxu0 0.0
    %190 = vmatpush.msra.mxu0 0.0
    %191 = vmatpush.msra.mxu0 0.0
    %192 = vmatpush.msra.mxu0 0.0
    %193 = vmatpush.msra.mxu0 0.0
    %194 = vmatpush.msra.mxu0 0.0
    %195 = vmatpush.msra.mxu0 0.0
    %196 = vmatpush.msra.mxu0 0.0
    %197 = vmatpush.msra.mxu0 0.0
    %198 = vmatpush.msra.mxu0 0.0
    %199 = vmatpush.msra.mxu0 0.0
    %200 = vmatpush.msra.mxu0 0.0
    %201 = vmatpush.msra.mxu0 %v41
    %202 = vmatpush.msra.mxu0 %v40
    %203 = vmatpush.msra.mxu0 %v39
    %204 = vmatpush.msra.mxu0 %v38
    %205 = vmatmul.f32.gmra.mxu0 %v187
    %v206 = vpop.f32.mrf.mxu0
    %v207 = vadd.f32 %v152, %v206
    %208 = vdwg.mxu0
    %v209 = vld [vmem:[%s1] sm:$0x3]
    %vm210 = vcmask 130048
    %v212 = vsel %vm210, %v207, 0
    %v215 = vsel %vm210, %v181, 0
    %v218 = vsel %vm210, %v184, 0
    %220 = vmatpush.xpose.msra.mxu0 0.0
    %221 = vmatpush.xpose.msra.mxu0 0.0
    %222 = vmatpush.xpose.msra.mxu0 0.0
    %223 = vmatpush.xpose.msra.mxu0 0.0
    %224 = vmatpush.xpose.msra.mxu0 0.0
    %225 = vmatpush.xpose.msra.mxu0 0.0
    %226 = vmatpush.xpose.msra.mxu0 0.0
    %227 = vmatpush.xpose.msra.mxu0 0.0
    %228 = vmatpush.xpose.msra.mxu0 0.0
    %229 = vmatpush.xpose.msra.mxu0 0.0
    %230 = vmatpush.xpose.msra.mxu0 0.0
    %231 = vmatpush.xpose.msra.mxu0 0.0
    %232 = vmatpush.xpose.msra.mxu0 0.0
    %233 = vmatpush.xpose.msra.mxu0 0.0
    %234 = vmatpush.xpose.msra.mxu0 %v218
    %235 = vmatpush.xpose.msra.mxu0 %v215
    %236 = vmatmul.f32.gmra.mxu0 %v212
    %v237 = vpop.f32.mrf.mxu0
    %v238 = vadd.f32 0.0, %v237
    %239 = vdwg.mxu0
    %v240 = vmul.f32 %v238, 0.25
    %v241 = vadd.f32 %v240, %v209
    %vm242 = vcmask 123904
    %v243 = vsel %vm242, %v241, -inf
    %244 = vmax.xlane.f32.xlu0 %v243
    %v245 = vpop.xlane.xlu0 %244
    %v246 = vsub.f32 %v241, %v245
    %v247 = vmul.f32 %v246, 1.442695
    %v248 = vpow.pop %v247
    %v249 = vsel %vm242, %v248, 0.0
    %250 = vadd.xlane.f32.xlu0 %v249
    %v251 = vpop.xlane.xlu0 %250
    %v252 = vrcp.pop %v251
    %v253 = vmul.f32 %v251, %v252
    %v254 = vsub.f32 1.0, %v253
    %v255 = vmul.f32 %v252, %v254
    %v256 = vadd.f32 %v252, %v255
    %vm257 = vweird.f32 %v251
    %vm258 = vweird.f32 %v252
    %vm259 = vmor %vm257, %vm258
    %v260 = vsel %vm259, %v252, %v256
    %v261 = vand.u32 2147483647, %v251
    %vm262 = vcmp.eq.f32.partialorder %v261, 8.507059e+37
    %v263 = vand.u32 %v251, 2147483648
    %v264 = vor.u32 1.1754944e-38, %v263
    %v265 = vsel %vm262, %v264, %v260
    %v266 = vmul.f32 %v248, %v265
    %267 = vrot.lane.b32.xlu0 %v181, 96
    %v268 = vpop.permute.xlu0 %267
    %269 = vrot.lane.b32.xlu0 %v184, 96
    %v270 = vpop.permute.xlu0 %269
    %v274 = vsel %vm210, %v266, 0
    %276 = vmatpush.msra.mxu0 0.0
    %277 = vmatpush.msra.mxu0 0.0
    %278 = vmatpush.msra.mxu0 0.0
    %279 = vmatpush.msra.mxu0 0.0
    %280 = vmatpush.msra.mxu0 0.0
    %281 = vmatpush.msra.mxu0 0.0
    %282 = vmatpush.msra.mxu0 0.0
    %283 = vmatpush.msra.mxu0 0.0
    %284 = vmatpush.msra.mxu0 0.0
    %285 = vmatpush.msra.mxu0 0.0
    %286 = vmatpush.msra.mxu0 0.0
    %287 = vmatpush.msra.mxu0 0.0
    %288 = vmatpush.msra.mxu0 0.0
    %289 = vmatpush.msra.mxu0 0.0
    %290 = vmatpush.msra.mxu0 %v270
    %291 = vmatpush.msra.mxu0 %v268
    %292 = vmatmul.f32.gmra.mxu0 %v274
    %v293 = vpop.f32.mrf.mxu0
    %v294 = vadd.f32 0.0, %v293
    %295 = vdwg.mxu0
    %296 = vrot.lane.b32.xlu0 %v207, 112
    %v297 = vpop.permute.xlu0 %296
    %298 = vrot.lane.b32.xlu0 %v181, 112
    %v299 = vpop.permute.xlu0 %298
    %300 = vrot.lane.b32.xlu0 %v184, 112
    %v301 = vpop.permute.xlu0 %300
    %v302 = vsel %vm210, %v297, 0
    %v304 = vsel %vm210, %v299, 0
    %v306 = vsel %vm210, %v301, 0
    %308 = vmatpush.xpose.msra.mxu0 0.0
    %309 = vmatpush.xpose.msra.mxu0 0.0
    %310 = vmatpush.xpose.msra.mxu0 0.0
    %311 = vmatpush.xpose.msra.mxu0 0.0
    %312 = vmatpush.xpose.msra.mxu0 0.0
    %313 = vmatpush.xpose.msra.mxu0 0.0
    %314 = vmatpush.xpose.msra.mxu0 0.0
    %315 = vmatpush.xpose.msra.mxu0 0.0
    %316 = vmatpush.xpose.msra.mxu0 0.0
    %317 = vmatpush.xpose.msra.mxu0 0.0
    %318 = vmatpush.xpose.msra.mxu0 0.0
    %319 = vmatpush.xpose.msra.mxu0 0.0
    %320 = vmatpush.xpose.msra.mxu0 0.0
    %321 = vmatpush.xpose.msra.mxu0 0.0
    %322 = vmatpush.xpose.msra.mxu0 %v306
    %323 = vmatpush.xpose.msra.mxu0 %v304
    %324 = vmatmul.f32.gmra.mxu0 %v302
    %v325 = vpop.f32.mrf.mxu0
    %v326 = vadd.f32 0.0, %v325
    %327 = vdwg.mxu0
    %v328 = vmul.f32 %v326, 0.25
    %v329 = vadd.f32 %v328, %v209
    %v330 = vsel %vm242, %v329, -inf
    %331 = vmax.xlane.f32.xlu0 %v330
    %v332 = vpop.xlane.xlu0 %331
    %v333 = vsub.f32 %v329, %v332
    %v334 = vmul.f32 %v333, 1.442695
    %v335 = vpow.pop %v334
    %v336 = vsel %vm242, %v335, 0.0
    %337 = vadd.xlane.f32.xlu0 %v336
    %v338 = vpop.xlane.xlu0 %337
    %v339 = vrcp.pop %v338
    %v340 = vmul.f32 %v338, %v339
    %v341 = vsub.f32 1.0, %v340
    %v342 = vmul.f32 %v339, %v341
    %v343 = vadd.f32 %v339, %v342
    %vm344 = vweird.f32 %v338
    %vm345 = vweird.f32 %v339
    %vm346 = vmor %vm344, %vm345
    %v347 = vsel %vm346, %v339, %v343
    %v348 = vand.u32 2147483647, %v338
    %vm349 = vcmp.eq.f32.partialorder %v348, 8.507059e+37
    %v350 = vand.u32 %v338, 2147483648
    %v351 = vor.u32 1.1754944e-38, %v350
    %v352 = vsel %vm349, %v351, %v347
    %v353 = vmul.f32 %v335, %v352
    %354 = vrot.lane.b32.xlu0 %v181, 80
    %v355 = vpop.permute.xlu0 %354
    %356 = vrot.lane.b32.xlu0 %v184, 80
    %v357 = vpop.permute.xlu0 %356
    %v361 = vsel %vm210, %v353, 0
    %363 = vmatpush.msra.mxu0 0.0
    %364 = vmatpush.msra.mxu0 0.0
    %365 = vmatpush.msra.mxu0 0.0
    %366 = vmatpush.msra.mxu0 0.0
    %367 = vmatpush.msra.mxu0 0.0
    %368 = vmatpush.msra.mxu0 0.0
    %369 = vmatpush.msra.mxu0 0.0
    %370 = vmatpush.msra.mxu0 0.0
    %371 = vmatpush.msra.mxu0 0.0
    %372 = vmatpush.msra.mxu0 0.0
    %373 = vmatpush.msra.mxu0 0.0
    %374 = vmatpush.msra.mxu0 0.0
    %375 = vmatpush.msra.mxu0 0.0
    %376 = vmatpush.msra.mxu0 0.0
    %377 = vmatpush.msra.mxu0 %v357
    %378 = vmatpush.msra.mxu0 %v355
    %379 = vmatmul.f32.gmra.mxu0 %v361
    %v380 = vpop.f32.mrf.mxu0
    %v381 = vadd.f32 0.0, %v380
    %382 = vdwg.mxu0
    %384 = vrot.lane.b32.xlu0 %v381, 16
    %v385 = vpop.permute.xlu0 %384
    %v387 = vsel %vm210, %v294, %v385
    %388 = vrot.lane.b32.xlu0 %v152, 32
    %v389 = vpop.permute.xlu0 %388
    %v392 = vsel %vm68, %v387, 0
    %394 = vmatpush.msra.mxu0 0.0
    %395 = vmatpush.msra.mxu0 0.0
    %396 = vmatpush.msra.mxu0 0.0
    %397 = vmatpush.msra.mxu0 0.0
    %398 = vmatpush.msra.mxu0 0.0
    %399 = vmatpush.msra.mxu0 0.0
    %400 = vmatpush.msra.mxu0 0.0
    %401 = vmatpush.msra.mxu0 0.0
    %402 = vmatpush.msra.mxu0 0.0
    %403 = vmatpush.msra.mxu0 0.0
    %404 = vmatpush.msra.mxu0 0.0
    %405 = vmatpush.msra.mxu0 0.0
    %406 = vmatpush.msra.mxu0 %v45
    %407 = vmatpush.msra.mxu0 %v44
    %408 = vmatpush.msra.mxu0 %v43
    %409 = vmatpush.msra.mxu0 %v42
    %410 = vmatmul.f32.gmra.mxu0 %v392
    %v411 = vpop.f32.mrf.mxu0
    %v412 = vadd.f32 %v389, %v411
    %413 = vdwg.mxu0
    %v414 = vadd.f32 %v151, %v412
    %v415 = vsel %vm127, %v414, 0.0
    %416 = vadd.xlane.f32.xlu0 %v415
    %v417 = vpop.xlane.xlu0 %416
    %v418 = vmul.f32 %v417, %v81
    %v419 = vsub.f32 %v414, %v418
    %v420 = vmul.f32 %v419, %v419
    %v421 = vsel %vm127, %v420, 0.0
    %422 = vadd.xlane.f32.xlu0 %v421
    %v423 = vpop.xlane.xlu0 %422
    %v424 = vmul.f32 %v423, %v81
    %v425 = vadd.f32 %v424, 1e-12
    %v426 = vrsqrt.pop %v425
    %v427 = vmul.f32 %v426, %v425
    %v428 = vmul.f32 %v427, %v426
    %v429 = vmul.f32 0.5, %v428
    %v430 = vsub.f32 1.5, %v429
    %v431 = vmul.f32 %v426, %v430
    %vm432 = vweird.f32 %v425
    %vm433 = vweird.f32 %v426
    %vm434 = vmor %vm432, %vm433
    %v435 = vsel %vm434, %v426, %v431
    %v436 = vmul.f32 %v419, %v435
    %438 = vrot.lane.b32.xlu0 %v120, 96
    %v439 = vpop.permute.xlu0 %438
    %v441 = vmul.f32 %v436, %v439
    %443 = vrot.lane.b32.xlu0 %v123, 96
    %v444 = vpop.permute.xlu0 %443
    %v446 = vadd.f32 %v441, %v444
    %v447 = vperm.slane %v37, 3
    %v449 = vsel %vm68, %v446, 0
    %451 = vmatpush.msra.mxu0 0.0
    %452 = vmatpush.msra.mxu0 0.0
    %453 = vmatpush.msra.mxu0 0.0
    %454 = vmatpush.msra.mxu0 0.0
    %455 = vmatpush.msra.mxu0 0.0
    %456 = vmatpush.msra.mxu0 0.0
    %457 = vmatpush.msra.mxu0 0.0
    %458 = vmatpush.msra.mxu0 0.0
    %459 = vmatpush.msra.mxu0 0.0
    %460 = vmatpush.msra.mxu0 0.0
    %461 = vmatpush.msra.mxu0 0.0
    %462 = vmatpush.msra.mxu0 0.0
    %463 = vmatpush.msra.mxu0 %v65
    %464 = vmatpush.msra.mxu0 %v64
    %465 = vmatpush.msra.mxu0 %v63
    %466 = vmatpush.msra.mxu0 %v62
    %467 = vmatmul.f32.gmra.mxu0 %v449
    %v468 = vpop.f32.mrf.mxu0
    %v469 = vadd.f32 %v447, %v468
    %470 = vdwg.mxu0
    %v471 = vmul.f32 %v469, 0.5
    %v472 = vmul.f32 %v469, 0.044715
    %v473 = vmul.f32 %v472, %v469
    %v474 = vmul.f32 %v473, %v469
    %v475 = vadd.f32 %v469, %v474
    %v476 = vmul.f32 %v475, 0.7978846
    %v477 = vtanh.pop %v476
    %v478 = vadd.f32 %v477, 1.0
    %v479 = vmul.f32 %v471, %v478
    %481 = vrot.lane.b32.xlu0 %v447, 64
    %v482 = vpop.permute.xlu0 %481
    %vm484 = vcmask 523264
    %v486 = vsel %vm484, %v479, 0
    %488 = vmatpush.msra.mxu0 0.0
    %489 = vmatpush.msra.mxu0 0.0
    %490 = vmatpush.msra.mxu0 0.0
    %491 = vmatpush.msra.mxu0 0.0
    %492 = vmatpush.msra.mxu0 0.0
    %493 = vmatpush.msra.mxu0 0.0
    %494 = vmatpush.msra.mxu0 0.0
    %495 = vmatpush.msra.mxu0 0.0
    %496 = vmatpush.msra.mxu0 %v57
    %497 = vmatpush.msra.mxu0 %v56
    %498 = vmatpush.msra.mxu0 %v55
    %499 = vmatpush.msra.mxu0 %v54
    %500 = vmatpush.msra.mxu0 %v53
    %501 = vmatpush.msra.mxu0 %v52
    %502 = vmatpush.msra.mxu0 %v51
    %503 = vmatpush.msra.mxu0 %v50
    %504 = vmatmul.f32.gmra.mxu0 %v486
    %v505 = vpop.f32.mrf.mxu0
    %v506 = vadd.f32 %v482, %v505
    %507 = vdwg.mxu0
    %v508 = vadd.f32 %v446, %v506
    %v509 = vsel %vm127, %v508, 0.0
    %510 = vadd.xlane.f32.xlu0 %v509
    %v511 = vpop.xlane.xlu0 %510
    %v512 = vmul.f32 %v511, %v81
    %v513 = vsub.f32 %v508, %v512
    %v514 = vmul.f32 %v513, %v513
    %v515 = vsel %vm127, %v514, 0.0
    %516 = vadd.xlane.f32.xlu0 %v515
    %v517 = vpop.xlane.xlu0 %516
    %v518 = vmul.f32 %v517, %v81
    %v519 = vadd.f32 %v518, 1e-12
    %v520 = vrsqrt.pop %v519
    %v521 = vmul.f32 %v520, %v519
    %v522 = vmul.f32 %v521, %v520
    %v523 = vmul.f32 0.5, %v522
    %v524 = vsub.f32 1.5, %v523
    %v525 = vmul.f32 %v520, %v524
    %vm526 = vweird.f32 %v519
    %vm527 = vweird.f32 %v520
    %vm528 = vmor %vm526, %vm527
    %v529 = vsel %vm528, %v520, %v525
    %v530 = vmul.f32 %v513, %v529
    %531 = vrot.lane.b32.xlu0 %v120, 64
    %v532 = vpop.permute.xlu0 %531
    %v534 = vmul.f32 %v530, %v532
    %535 = vrot.lane.b32.xlu0 %v123, 64
    %v536 = vpop.permute.xlu0 %535
    %v538 = vadd.f32 %v534, %v536
    %539 = vrot.lane.b32.xlu0 %v447, 32
    %v540 = vpop.permute.xlu0 %539
    %v543 = vsel %vm68, %v538, 0
    %545 = vmatpush.msra.mxu0 0.0
    %546 = vmatpush.msra.mxu0 0.0
    %547 = vmatpush.msra.mxu0 0.0
    %548 = vmatpush.msra.mxu0 0.0
    %549 = vmatpush.msra.mxu0 0.0
    %550 = vmatpush.msra.mxu0 0.0
    %551 = vmatpush.msra.mxu0 0.0
    %552 = vmatpush.msra.mxu0 0.0
    %553 = vmatpush.msra.mxu0 0.0
    %554 = vmatpush.msra.mxu0 0.0
    %555 = vmatpush.msra.mxu0 0.0
    %556 = vmatpush.msra.mxu0 0.0
    %557 = vmatpush.msra.mxu0 %v49
    %558 = vmatpush.msra.mxu0 %v48
    %559 = vmatpush.msra.mxu0 %v47
    %560 = vmatpush.msra.mxu0 %v46
    %561 = vmatmul.f32.gmra.mxu0 %v543
    %v562 = vpop.f32.mrf.mxu0
    %v563 = vadd.f32 %v540, %v562
    %564 = vdwg.mxu0
    %v565 = vtanh.pop %v563
    %s566 = scalar_lea.vmem %s4, 8
    %v567 = vld [vmem:[%s566] sm:$0xff]
    %s568 = scalar_lea.vmem %s2, 160
    %v569 = vld [vmem:[%s568] sm:$0xff]
    %v570 = vld [vmem:[%s568 + $0x8] sm:$0xff]
    %v571 = vld [vmem:[%s568 + $0x10] sm:$0xff]
    %v572 = vld [vmem:[%s568 + $0x18] sm:$0xff]
    %v573 = vld [vmem:[%s568 + $0x20] sm:$0xff]
    %v574 = vld [vmem:[%s568 + $0x28] sm:$0xff]
    %v575 = vld [vmem:[%s568 + $0x30] sm:$0xff]
    %v576 = vld [vmem:[%s568 + $0x38] sm:$0xff]
    %v577 = vld [vmem:[%s568 + $0x40] sm:$0xff]
    %v578 = vld [vmem:[%s568 + $0x48] sm:$0xff]
    %v579 = vld [vmem:[%s568 + $0x50] sm:$0xff]
    %v580 = vld [vmem:[%s568 + $0x58] sm:$0xff]
    %v581 = vld [vmem:[%s568 + $0x60] sm:$0xff]
    %v582 = vld [vmem:[%s568 + $0x68] sm:$0xff]
    %v583 = vld [vmem:[%s568 + $0x70] sm:$0xff]
    %v584 = vld [vmem:[%s568 + $0x78] sm:$0xff]
    %v585 = vld [vmem:[%s568 + $0x80] sm:$0xff]
    %v586 = vld [vmem:[%s568 + $0x88] sm:$0xff]
    %v587 = vld [vmem:[%s568 + $0x90] sm:$0xff]
    %v588 = vld [vmem:[%s568 + $0x98] sm:$0xff]
    %s589 = scalar_lea.vmem %s3, 64
    %v590 = vld [vmem:[%s589] sm:$0xff]
    %v591 = vld [vmem:[%s589 + $0x8] sm:$0xff]
    %v592 = vld [vmem:[%s589 + $0x10] sm:$0xff]
    %v593 = vld [vmem:[%s589 + $0x18] sm:$0xff]
    %v594 = vld [vmem:[%s589 + $0x20] sm:$0xff]
    %v595 = vld [vmem:[%s589 + $0x28] sm:$0xff]
    %v596 = vld [vmem:[%s589 + $0x30] sm:$0xff]
    %v597 = vld [vmem:[%s589 + $0x38] sm:$0xff]
    %v598 = vld [vmem:[%s0 + $0x10] sm:$0xff]
    %v599 = vld [vmem:[%s0 + $0x18] sm:$0xff]
    %v600 = vsel %vm68, %v598, 0.0
    %601 = vadd.xlane.f32.xlu0 %v600
    %v602 = vpop.xlane.xlu0 %601
    %v603 = vsel %vm68, %v599, 0.0
    %604 = vadd.xlane.f32.xlu0 %v603
    %v605 = vpop.xlane.xlu0 %604
    %v606 = vmul.f32 %v602, %v81
    %v607 = vmul.f32 %v605, %v81
    %v608 = vsub.f32 %v598, %v606
    %v609 = vsub.f32 %v599, %v607
    %v610 = vmul.f32 %v608, %v608
    %v611 = vmul.f32 %v609, %v609
    %v612 = vsel %vm68, %v610, 0.0
    %613 = vadd.xlane.f32.xlu0 %v612
    %v614 = vpop.xlane.xlu0 %613
    %v615 = vsel %vm68, %v611, 0.0
    %616 = vadd.xlane.f32.xlu0 %v615
    %v617 = vpop.xlane.xlu0 %616
    %v618 = vmul.f32 %v614, %v81
    %v619 = vmul.f32 %v617, %v81
    %v620 = vadd.f32 %v618, 1e-12
    %v621 = vadd.f32 %v619, 1e-12
    %v622 = vrsqrt.pop %v620
    %v623 = vmul.f32 %v622, %v620
    %v624 = vmul.f32 %v623, %v622
    %v625 = vmul.f32 0.5, %v624
    %v626 = vsub.f32 1.5, %v625
    %v627 = vmul.f32 %v622, %v626
    %vm628 = vweird.f32 %v620
    %vm629 = vweird.f32 %v622
    %vm630 = vmor %vm628, %vm629
    %v631 = vsel %vm630, %v622, %v627
    %v632 = vrsqrt.pop %v621
    %v633 = vmul.f32 %v632, %v621
    %v634 = vmul.f32 %v633, %v632
    %v635 = vmul.f32 0.5, %v634
    %v636 = vsub.f32 1.5, %v635
    %v637 = vmul.f32 %v632, %v636
    %vm638 = vweird.f32 %v621
    %vm639 = vweird.f32 %v632
    %vm640 = vmor %vm638, %vm639
    %v641 = vsel %vm640, %v632, %v637
    %v642 = vmul.f32 %v608, %v631
    %v643 = vmul.f32 %v609, %v641
    %v644 = vperm.slane %v567, 0
    %v645 = vmul.f32 %v642, %v644
    %v646 = vmul.f32 %v643, %v644
    %v647 = vperm.slane %v567, 1
    %v648 = vadd.f32 %v645, %v647
    %v649 = vadd.f32 %v646, %v647
    %v650 = vld [vmem:[%s0 + $0x22] sm:$0x3]
    %v651 = vsel %vm127, %v650, 0.0
    %652 = vadd.xlane.f32.xlu0 %v651
    %v653 = vpop.xlane.xlu0 %652
    %v654 = vmul.f32 %v653, %v81
    %v655 = vsub.f32 %v650, %v654
    %v656 = vmul.f32 %v655, %v655
    %v657 = vsel %vm127, %v656, 0.0
    %658 = vadd.xlane.f32.xlu0 %v657
    %v659 = vpop.xlane.xlu0 %658
    %v660 = vmul.f32 %v659, %v81
    %v661 = vadd.f32 %v660, 1e-12
    %v662 = vrsqrt.pop %v661
    %v663 = vmul.f32 %v662, %v661
    %v664 = vmul.f32 %v663, %v662
    %v665 = vmul.f32 0.5, %v664
    %v666 = vsub.f32 1.5, %v665
    %v667 = vmul.f32 %v662, %v666
    %vm668 = vweird.f32 %v661
    %vm669 = vweird.f32 %v662
    %vm670 = vmor %vm668, %vm669
    %v671 = vsel %vm670, %v662, %v667
    %v672 = vmul.f32 %v655, %v671
    %v673 = vmul.f32 %v672, %v644
    %v674 = vadd.f32 %v673, %v647
    %v675 = vperm.slane %v567, 2
    %677 = vrot.lane.b32.xlu0 %v675, 96
    %v678 = vpop.permute.xlu0 %677
    %v681 = vsel %vm68, %v648, 0
    %v684 = vsel %vm68, %v649, 0
    %686 = vmatpush.msra.mxu0 0.0
    %687 = vmatpush.msra.mxu0 0.0
    %688 = vmatpush.msra.mxu0 0.0
    %689 = vmatpush.msra.mxu0 0.0
    %690 = vmatpush.msra.mxu0 0.0
    %691 = vmatpush.msra.mxu0 0.0
    %692 = vmatpush.msra.mxu0 0.0
    %693 = vmatpush.msra.mxu0 0.0
    %694 = vmatpush.msra.mxu0 0.0
    %695 = vmatpush.msra.mxu0 0.0
    %696 = vmatpush.msra.mxu0 0.0
    %697 = vmatpush.msra.mxu0 0.0
    %698 = vmatpush.msra.mxu0 %v593
    %699 = vmatpush.msra.mxu0 %v592
    %700 = vmatpush.msra.mxu0 %v591
    %701 = vmatpush.msra.mxu0 %v590
    %702 = vmatmul.f32.gmra.mxu0 %v681
    %v703 = vpop.f32.mrf.mxu0
    %v704 = vadd.f32 %v678, %v703
    %705 = vmatmul.f32.gmra.mxu0 %v684
    %v706 = vpop.f32.mrf.mxu0
    %v707 = vadd.f32 %v678, %v706
    %708 = vdwg.mxu0
    %v710 = vsel %vm68, %v674, 0
    %712 = vmatpush.msra.mxu0 0.0
    %713 = vmatpush.msra.mxu0 0.0
    %714 = vmatpush.msra.mxu0 0.0
    %715 = vmatpush.msra.mxu0 0.0
    %716 = vmatpush.msra.mxu0 0.0
    %717 = vmatpush.msra.mxu0 0.0
    %718 = vmatpush.msra.mxu0 0.0
    %719 = vmatpush.msra.mxu0 0.0
    %720 = vmatpush.msra.mxu0 0.0
    %721 = vmatpush.msra.mxu0 0.0
    %722 = vmatpush.msra.mxu0 0.0
    %723 = vmatpush.msra.mxu0 0.0
    %724 = vmatpush.msra.mxu0 %v572
    %725 = vmatpush.msra.mxu0 %v571
    %726 = vmatpush.msra.mxu0 %v570
    %727 = vmatpush.msra.mxu0 %v569
    %728 = vmatmul.f32.gmra.mxu0 %v710
    %v729 = vpop.f32.mrf.mxu0
    %v730 = vadd.f32 %v675, %v729
    %731 = vdwg.mxu0
    %v732 = vld [vmem:[%s1 + $0x2] sm:$0x3]
    %v734 = vsel %vm210, %v730, 0
    %v737 = vsel %vm210, %v704, 0
    %v740 = vsel %vm210, %v707, 0
    %742 = vmatpush.xpose.msra.mxu0 0.0
    %743 = vmatpush.xpose.msra.mxu0 0.0
    %744 = vmatpush.xpose.msra.mxu0 0.0
    %745 = vmatpush.xpose.msra.mxu0 0.0
    %746 = vmatpush.xpose.msra.mxu0 0.0
    %747 = vmatpush.xpose.msra.mxu0 0.0
    %748 = vmatpush.xpose.msra.mxu0 0.0
    %749 = vmatpush.xpose.msra.mxu0 0.0
    %750 = vmatpush.xpose.msra.mxu0 0.0
    %751 = vmatpush.xpose.msra.mxu0 0.0
    %752 = vmatpush.xpose.msra.mxu0 0.0
    %753 = vmatpush.xpose.msra.mxu0 0.0
    %754 = vmatpush.xpose.msra.mxu0 0.0
    %755 = vmatpush.xpose.msra.mxu0 0.0
    %756 = vmatpush.xpose.msra.mxu0 %v740
    %757 = vmatpush.xpose.msra.mxu0 %v737
    %758 = vmatmul.f32.gmra.mxu0 %v734
    %v759 = vpop.f32.mrf.mxu0
    %v760 = vadd.f32 0.0, %v759
    %761 = vdwg.mxu0
    %v762 = vmul.f32 %v760, 0.25
    %v763 = vadd.f32 %v762, %v732
    %v764 = vsel %vm242, %v763, -inf
    %765 = vmax.xlane.f32.xlu0 %v764
    %v766 = vpop.xlane.xlu0 %765
    %v767 = vsub.f32 %v763, %v766
    %v768 = vmul.f32 %v767, 1.442695
    %v769 = vpow.pop %v768
    %v770 = vsel %vm242, %v769, 0.0
    %771 = vadd.xlane.f32.xlu0 %v770
    %v772 = vpop.xlane.xlu0 %771
    %v773 = vrcp.pop %v772
    %v774 = vmul.f32 %v772, %v773
    %v775 = vsub.f32 1.0, %v774
    %v776 = vmul.f32 %v773, %v775
    %v777 = vadd.f32 %v773, %v776
    %vm778 = vweird.f32 %v772
    %vm779 = vweird.f32 %v773
    %vm780 = vmor %vm778, %vm779
    %v781 = vsel %vm780, %v773, %v777
    %v782 = vand.u32 2147483647, %v772
    %vm783 = vcmp.eq.f32.partialorder %v782, 8.507059e+37
    %v784 = vand.u32 %v772, 2147483648
    %v785 = vor.u32 1.1754944e-38, %v784
    %v786 = vsel %vm783, %v785, %v781
    %v787 = vmul.f32 %v769, %v786
    %788 = vrot.lane.b32.xlu0 %v704, 96
    %v789 = vpop.permute.xlu0 %788
    %790 = vrot.lane.b32.xlu0 %v707, 96
    %v791 = vpop.permute.xlu0 %790
    %v795 = vsel %vm210, %v787, 0
    %797 = vmatpush.msra.mxu0 0.0
    %798 = vmatpush.msra.mxu0 0.0
    %799 = vmatpush.msra.mxu0 0.0
    %800 = vmatpush.msra.mxu0 0.0
    %801 = vmatpush.msra.mxu0 0.0
    %802 = vmatpush.msra.mxu0 0.0
    %803 = vmatpush.msra.mxu0 0.0
    %804 = vmatpush.msra.mxu0 0.0
    %805 = vmatpush.msra.mxu0 0.0
    %806 = vmatpush.msra.mxu0 0.0
    %807 = vmatpush.msra.mxu0 0.0
    %808 = vmatpush.msra.mxu0 0.0
    %809 = vmatpush.msra.mxu0 0.0
    %810 = vmatpush.msra.mxu0 0.0
    %811 = vmatpush.msra.mxu0 %v791
    %812 = vmatpush.msra.mxu0 %v789
    %813 = vmatmul.f32.gmra.mxu0 %v795
    %v814 = vpop.f32.mrf.mxu0
    %v815 = vadd.f32 0.0, %v814
    %816 = vdwg.mxu0
    %817 = vrot.lane.b32.xlu0 %v730, 112
    %v818 = vpop.permute.xlu0 %817
    %819 = vrot.lane.b32.xlu0 %v704, 112
    %v820 = vpop.permute.xlu0 %819
    %821 = vrot.lane.b32.xlu0 %v707, 112
    %v822 = vpop.permute.xlu0 %821
    %v823 = vsel %vm210, %v818, 0
    %v825 = vsel %vm210, %v820, 0
    %v827 = vsel %vm210, %v822, 0
    %829 = vmatpush.xpose.msra.mxu0 0.0
    %830 = vmatpush.xpose.msra.mxu0 0.0
    %831 = vmatpush.xpose.msra.mxu0 0.0
    %832 = vmatpush.xpose.msra.mxu0 0.0
    %833 = vmatpush.xpose.msra.mxu0 0.0
    %834 = vmatpush.xpose.msra.mxu0 0.0
    %835 = vmatpush.xpose.msra.mxu0 0.0
    %836 = vmatpush.xpose.msra.mxu0 0.0
    %837 = vmatpush.xpose.msra.mxu0 0.0
    %838 = vmatpush.xpose.msra.mxu0 0.0
    %839 = vmatpush.xpose.msra.mxu0 0.0
    %840 = vmatpush.xpose.msra.mxu0 0.0
    %841 = vmatpush.xpose.msra.mxu0 0.0
    %842 = vmatpush.xpose.msra.mxu0 0.0
    %843 = vmatpush.xpose.msra.mxu0 %v827
    %844 = vmatpush.xpose.msra.mxu0 %v825
    %845 = vmatmul.f32.gmra.mxu0 %v823
    %v846 = vpop.f32.mrf.mxu0
    %v847 = vadd.f32 0.0, %v846
    %848 = vdwg.mxu0
    %v849 = vmul.f32 %v847, 0.25
    %v850 = vadd.f32 %v849, %v732
    %v851 = vsel %vm242, %v850, -inf
    %852 = vmax.xlane.f32.xlu0 %v851
    %v853 = vpop.xlane.xlu0 %852
    %v854 = vsub.f32 %v850, %v853
    %v855 = vmul.f32 %v854, 1.442695
    %v856 = vpow.pop %v855
    %v857 = vsel %vm242, %v856, 0.0
    %858 = vadd.xlane.f32.xlu0 %v857
    %v859 = vpop.xlane.xlu0 %858
    %v860 = vrcp.pop %v859
    %v861 = vmul.f32 %v859, %v860
    %v862 = vsub.f32 1.0, %v861
    %v863 = vmul.f32 %v860, %v862
    %v864 = vadd.f32 %v860, %v863
    %vm865 = vweird.f32 %v859
    %vm866 = vweird.f32 %v860
    %vm867 = vmor %vm865, %vm866
    %v868 = vsel %vm867, %v860, %v864
    %v869 = vand.u32 2147483647, %v859
    %vm870 = vcmp.eq.f32.partialorder %v869, 8.507059e+37
    %v871 = vand.u32 %v859, 2147483648
    %v872 = vor.u32 1.1754944e-38, %v871
    %v873 = vsel %vm870, %v872, %v868
    %v874 = vmul.f32 %v856, %v873
    %875 = vrot.lane.b32.xlu0 %v704, 80
    %v876 = vpop.permute.xlu0 %875
    %877 = vrot.lane.b32.xlu0 %v707, 80
    %v878 = vpop.permute.xlu0 %877
    %v882 = vsel %vm210, %v874, 0
    %884 = vmatpush.msra.mxu0 0.0
    %885 = vmatpush.msra.mxu0 0.0
    %886 = vmatpush.msra.mxu0 0.0
    %887 = vmatpush.msra.mxu0 0.0
    %888 = vmatpush.msra.mxu0 0.0
    %889 = vmatpush.msra.mxu0 0.0
    %890 = vmatpush.msra.mxu0 0.0
    %891 = vmatpush.msra.mxu0 0.0
    %892 = vmatpush.msra.mxu0 0.0
    %893 = vmatpush.msra.mxu0 0.0
    %894 = vmatpush.msra.mxu0 0.0
    %895 = vmatpush.msra.mxu0 0.0
    %896 = vmatpush.msra.mxu0 0.0
    %897 = vmatpush.msra.mxu0 0.0
    %898 = vmatpush.msra.mxu0 %v878
    %899 = vmatpush.msra.mxu0 %v876
    %900 = vmatmul.f32.gmra.mxu0 %v882
    %v901 = vpop.f32.mrf.mxu0
    %v902 = vadd.f32 0.0, %v901
    %903 = vdwg.mxu0
    %905 = vrot.lane.b32.xlu0 %v902, 16
    %v906 = vpop.permute.xlu0 %905
    %v908 = vsel %vm210, %v815, %v906
    %909 = vrot.lane.b32.xlu0 %v675, 32
    %v910 = vpop.permute.xlu0 %909
    %v913 = vsel %vm68, %v908, 0
    %915 = vmatpush.msra.mxu0 0.0
    %916 = vmatpush.msra.mxu0 0.0
    %917 = vmatpush.msra.mxu0 0.0
    %918 = vmatpush.msra.mxu0 0.0
    %919 = vmatpush.msra.mxu0 0.0
    %920 = vmatpush.msra.mxu0 0.0
    %921 = vmatpush.msra.mxu0 0.0
    %922 = vmatpush.msra.mxu0 0.0
    %923 = vmatpush.msra.mxu0 0.0
    %924 = vmatpush.msra.mxu0 0.0
    %925 = vmatpush.msra.mxu0 0.0
    %926 = vmatpush.msra.mxu0 0.0
    %927 = vmatpush.msra.mxu0 %v576
    %928 = vmatpush.msra.mxu0 %v575
    %929 = vmatpush.msra.mxu0 %v574
    %930 = vmatpush.msra.mxu0 %v573
    %931 = vmatmul.f32.gmra.mxu0 %v913
    %v932 = vpop.f32.mrf.mxu0
    %v933 = vadd.f32 %v910, %v932
    %934 = vdwg.mxu0
    %v935 = vadd.f32 %v674, %v933
    %v936 = vsel %vm127, %v935, 0.0
    %937 = vadd.xlane.f32.xlu0 %v936
    %v938 = vpop.xlane.xlu0 %937
    %v939 = vmul.f32 %v938, %v81
    %v940 = vsub.f32 %v935, %v939
    %v941 = vmul.f32 %v940, %v940
    %v942 = vsel %vm127, %v941, 0.0
    %943 = vadd.xlane.f32.xlu0 %v942
    %v944 = vpop.xlane.xlu0 %943
    %v945 = vmul.f32 %v944, %v81
    %v946 = vadd.f32 %v945, 1e-12
    %v947 = vrsqrt.pop %v946
    %v948 = vmul.f32 %v947, %v946
    %v949 = vmul.f32 %v948, %v947
    %v950 = vmul.f32 0.5, %v949
    %v951 = vsub.f32 1.5, %v950
    %v952 = vmul.f32 %v947, %v951
    %vm953 = vweird.f32 %v946
    %vm954 = vweird.f32 %v947
    %vm955 = vmor %vm953, %vm954
    %v956 = vsel %vm955, %v947, %v952
    %v957 = vmul.f32 %v940, %v956
    %959 = vrot.lane.b32.xlu0 %v644, 96
    %v960 = vpop.permute.xlu0 %959
    %v962 = vmul.f32 %v957, %v960
    %964 = vrot.lane.b32.xlu0 %v647, 96
    %v965 = vpop.permute.xlu0 %964
    %v967 = vadd.f32 %v962, %v965
    %v968 = vperm.slane %v567, 3
    %v970 = vsel %vm68, %v967, 0
    %972 = vmatpush.msra.mxu0 0.0
    %973 = vmatpush.msra.mxu0 0.0
    %974 = vmatpush.msra.mxu0 0.0
    %975 = vmatpush.msra.mxu0 0.0
    %976 = vmatpush.msra.mxu0 0.0
    %977 = vmatpush.msra.mxu0 0.0
    %978 = vmatpush.msra.mxu0 0.0
    %979 = vmatpush.msra.mxu0 0.0
    %980 = vmatpush.msra.mxu0 0.0
    %981 = vmatpush.msra.mxu0 0.0
    %982 = vmatpush.msra.mxu0 0.0
    %983 = vmatpush.msra.mxu0 0.0
    %984 = vmatpush.msra.mxu0 %v597
    %985 = vmatpush.msra.mxu0 %v596
    %986 = vmatpush.msra.mxu0 %v595
    %987 = vmatpush.msra.mxu0 %v594
    %988 = vmatmul.f32.gmra.mxu0 %v970
    %v989 = vpop.f32.mrf.mxu0
    %v990 = vadd.f32 %v968, %v989
    %991 = vdwg.mxu0
    %v992 = vmul.f32 %v990, 0.5
    %v993 = vmul.f32 %v990, 0.044715
    %v994 = vmul.f32 %v993, %v990
    %v995 = vmul.f32 %v994, %v990
    %v996 = vadd.f32 %v990, %v995
    %v997 = vmul.f32 %v996, 0.7978846
    %v998 = vtanh.pop %v997
    %v999 = vadd.f32 %v998, 1.0
    %v1000 = vmul.f32 %v992, %v999
    %1002 = vrot.lane.b32.xlu0 %v968, 64
    %v1003 = vpop.permute.xlu0 %1002
    %v1006 = vsel %vm484, %v1000, 0
    %1008 = vmatpush.msra.mxu0 0.0
    %1009 = vmatpush.msra.mxu0 0.0
    %1010 = vmatpush.msra.mxu0 0.0
    %1011 = vmatpush.msra.mxu0 0.0
    %1012 = vmatpush.msra.mxu0 0.0
    %1013 = vmatpush.msra.mxu0 0.0
    %1014 = vmatpush.msra.mxu0 0.0
    %1015 = vmatpush.msra.mxu0 0.0
    %1016 = vmatpush.msra.mxu0 %v588
    %1017 = vmatpush.msra.mxu0 %v587
    %1018 = vmatpush.msra.mxu0 %v586
    %1019 = vmatpush.msra.mxu0 %v585
    %1020 = vmatpush.msra.mxu0 %v584
    %1021 = vmatpush.msra.mxu0 %v583
    %1022 = vmatpush.msra.mxu0 %v582
    %1023 = vmatpush.msra.mxu0 %v581
    %1024 = vmatmul.f32.gmra.mxu0 %v1006
    %v1025 = vpop.f32.mrf.mxu0
    %v1026 = vadd.f32 %v1003, %v1025
    %1027 = vdwg.mxu0
    %v1028 = vadd.f32 %v967, %v1026
    %v1029 = vsel %vm127, %v1028, 0.0
    %1030 = vadd.xlane.f32.xlu0 %v1029
    %v1031 = vpop.xlane.xlu0 %1030
    %v1032 = vmul.f32 %v1031, %v81
    %v1033 = vsub.f32 %v1028, %v1032
    %v1034 = vmul.f32 %v1033, %v1033
    %v1035 = vsel %vm127, %v1034, 0.0
    %1036 = vadd.xlane.f32.xlu0 %v1035
    %v1037 = vpop.xlane.xlu0 %1036
    %v1038 = vmul.f32 %v1037, %v81
    %v1039 = vadd.f32 %v1038, 1e-12
    %v1040 = vrsqrt.pop %v1039
    %v1041 = vmul.f32 %v1040, %v1039
    %v1042 = vmul.f32 %v1041, %v1040
    %v1043 = vmul.f32 0.5, %v1042
    %v1044 = vsub.f32 1.5, %v1043
    %v1045 = vmul.f32 %v1040, %v1044
    %vm1046 = vweird.f32 %v1039
    %vm1047 = vweird.f32 %v1040
    %vm1048 = vmor %vm1046, %vm1047
    %v1049 = vsel %vm1048, %v1040, %v1045
    %v1050 = vmul.f32 %v1033, %v1049
    %1051 = vrot.lane.b32.xlu0 %v644, 64
    %v1052 = vpop.permute.xlu0 %1051
    %v1054 = vmul.f32 %v1050, %v1052
    %1055 = vrot.lane.b32.xlu0 %v647, 64
    %v1056 = vpop.permute.xlu0 %1055
    %v1058 = vadd.f32 %v1054, %v1056
    %1059 = vrot.lane.b32.xlu0 %v968, 32
    %v1060 = vpop.permute.xlu0 %1059
    %v1063 = vsel %vm68, %v1058, 0
    %1065 = vmatpush.msra.mxu0 0.0
    %1066 = vmatpush.msra.mxu0 0.0
    %1067 = vmatpush.msra.mxu0 0.0
    %1068 = vmatpush.msra.mxu0 0.0
    %1069 = vmatpush.msra.mxu0 0.0
    %1070 = vmatpush.msra.mxu0 0.0
    %1071 = vmatpush.msra.mxu0 0.0
    %1072 = vmatpush.msra.mxu0 0.0
    %1073 = vmatpush.msra.mxu0 0.0
    %1074 = vmatpush.msra.mxu0 0.0
    %1075 = vmatpush.msra.mxu0 0.0
    %1076 = vmatpush.msra.mxu0 0.0
    %1077 = vmatpush.msra.mxu0 %v580
    %1078 = vmatpush.msra.mxu0 %v579
    %1079 = vmatpush.msra.mxu0 %v578
    %1080 = vmatpush.msra.mxu0 %v577
    %1081 = vmatmul.f32.gmra.mxu0 %v1063
    %v1082 = vpop.f32.mrf.mxu0
    %v1083 = vadd.f32 %v1060, %v1082
    %1084 = vdwg.mxu0
    %v1085 = vtanh.pop %v1083
    %v1087 = vsel %vm68, %v1085, 0
    %v1090 = vsel %vm68, %v565, 0
    %1092 = vmatpush.xpose.msra.mxu0 0.0
    %1093 = vmatpush.xpose.msra.mxu0 0.0
    %1094 = vmatpush.xpose.msra.mxu0 0.0
    %1095 = vmatpush.xpose.msra.mxu0 0.0
    %1096 = vmatpush.xpose.msra.mxu0 0.0
    %1097 = vmatpush.xpose.msra.mxu0 0.0
    %1098 = vmatpush.xpose.msra.mxu0 0.0
    %1099 = vmatpush.xpose.msra.mxu0 0.0
    %1100 = vmatpush.xpose.msra.mxu0 0.0
    %1101 = vmatpush.xpose.msra.mxu0 0.0
    %1102 = vmatpush.xpose.msra.mxu0 0.0
    %1103 = vmatpush.xpose.msra.mxu0 0.0
    %1104 = vmatpush.xpose.msra.mxu0 0.0
    %1105 = vmatpush.xpose.msra.mxu0 0.0
    %1106 = vmatpush.xpose.msra.mxu0 0.0
    %1107 = vmatpush.xpose.msra.mxu0 %v1090
    %1108 = vmatmul.f32.gmra.mxu0 %v1087
    %v1109 = vpop.f32.mrf.mxu0
    %v1110 = vadd.f32 0.0, %v1109
    %1111 = vdwg.mxu0
    %vm1112 = vcmask 9216
    %v1113 = vsel %vm1112, %v1110, -inf
    %1114 = vmax.xlane.f32.xlu0 %v1113
    %v1115 = vpop.xlane.xlu0 %1114
    %v1116 = vsub.f32 %v1110, %v1115
    %v1117 = vmul.f32 %v1116, 1.442695
    %v1118 = vpow.pop %v1117
    %v1119 = vsel %vm1112, %v1118, 0.0
    %1120 = vadd.xlane.f32.xlu0 %v1119
    %v1121 = vpop.xlane.xlu0 %1120
    %v1122 = vlog2.pop %v1121
    %v1123 = vmul.f32 %v1122, 0.6931472
    %v1124 = vadd.f32 %v1115, %v1123
    %v1125 = vsub.f32 %v1110, %v1124
    %v1126 = vlaneseq
    %v1127 = vand.u32 %v1126, 127
    %s1128 = sld [smem:[#allocation2]]
    %v1129 = vstv %s1128
    %vm1130 = vcmp.eq.s32.totalorder %v1127, %v1129
    %v1131 = vsel %vm1130, %v1125, 0.0
    %vm1132 = vcmask 8192
    %v1133 = vsel %vm1132, %v1131, 0.0
    %1134 = vadd.xlane.f32.xlu0 %v1133
    %v1135 = vpop.xlane.xlu0 %1134
    %v1136 = vadd.f32 %v1135, 0.0
    %s1137 = sld [smem:[#allocation2 + $0x1]]
    %v1138 = vstv %s1137
    %vm1139 = vcmp.eq.s32.totalorder %v1127, %v1138
    %v1140 = vsel %vm1139, %v1125, 0.0
    %vm1141 = vcmask 9217
    %v1142 = vsel %vm1141, %v1140, 0.0
    %1143 = vadd.xlane.f32.xlu0 %v1142
    %v1144 = vpop.xlane.xlu0 %1143
    %v1146 = vrot.slane %v1144, 1
    %v1148 = vadd.f32 %v1136, %v1146
    %v1149 = vsub.f32 0.0, %v1148
    %v1150 = vrcp.pop 2.0
    %v1151 = vmul.f32 2.0, %v1150
    %v1152 = vsub.f32 1.0, %v1151
    %v1153 = vmul.f32 %v1150, %v1152
    %v1154 = vadd.f32 %v1150, %v1153
    %vm1155 = vweird.f32 %v1150
    %v1156 = vsel %vm1155, %v1150, %v1154
    %v1157 = vmul.f32 %v1149, %v1156
    %v1158 = vrot.slane %v1085, 6
    %vm1160 = vcmask 1041408
    %v1161 = vsel %vm1160, %v565, %v1158
    %v1162 = vsel %vm68, %v1161, 0.0
    %vm1163 = vcmask 15360
    %v1164 = vsel %vm1163, %v1110, 0.0
    %vm1165 = vcmask 7168
    %v1166 = vsel %vm1165, %v1157, 0.0
    %v1168 = vrot.slane %v1164, 4
    %v1171 = vrot.slane %v1166, 2
    %vm1173 = vcmask 1043456
    %v1174 = vsel %vm1173, %v1162, %v1168
    %vm1175 = vcmask 1045504
    %v1176 = vsel %vm1175, %v1174, %v1171
    %vm1177 = vcmask 1046528
    %v1178 = vsel %vm1177, %v1176, 0.0
    %1179 = vst [vmem:[#allocation5] sm:$0xff] %v1178
    // Predicated region
    $region30: #{tpu_custom_call.1} parent=1 // pred_check
      _
    $region31: #{tpu_custom_call.1} parent=1 // pred_check_branch
      %1181 = sbr.rel (0) target = $region33
    $region32: #{tpu_custom_call.1} parent=1 // pred_region
      %1183 = vsyncadd [#allocation3], 0
      %s1185 = sshll.u32 [#allocation5], 4
      %s1186 = int_to_ptr.vmem [resolvable:$true] %s1185
      %s1187 = sshll.u32 %s6, 4
      %s1188 = int_to_ptr.hbm [resolvable:$true] %s1187
      %1190 = dma.vmem_to_hbm [thread:$0]  %s1186, 128, %s1188, [#allocation3]
    $region33: #{tpu_custom_call.1} parent=1 // pred_fallthru
      _
    // Predicated region
    $region34: #{tpu_custom_call.1} parent=1 // pred_check
      _
    $region35: #{tpu_custom_call.1} parent=1 // pred_check_branch
      %1192 = sbr.rel (0) target = $region37
    $region36: #{tpu_custom_call.1} parent=1 // pred_region
      %1194 = dma.done [#allocation3], 128
    $region37: #{tpu_custom_call.1} parent=1 // pred_fallthru
      _
    %1195 = vsyncpa [#allocation3], 1
    %1196 = vsyncpa [#allocation4], 1

</llo_original>
